<compile_context>
chip_gen: v5e
topology: v5e:2x2
jax: 0.10.0
libtpu: 0.0.40
codegen_flags: <defaults>
</compile_context>

<pallas_src>
import functools

import jax
import jax.numpy as jnp
from jax.experimental import pallas as pl
from jax.experimental.pallas import tpu as pltpu

EPS = 1e-5  # nn.LayerNorm default eps


def _round_up(a, b):
    return (a + b - 1) // b * b


def _pick_col_block(d, target):
    """Largest multiple of 128 that divides d and is <= target (falls back to d)."""
    b = min(target, d)
    b -= b % 128
    while b >= 128:
        if d % b == 0:
            return b
        b -= 128
    return d


def _bspec(shape, index_map, n_buf=None):
    """BlockSpec with an optional pipeline_mode=pl.Buffered(n) request.

    Falls back to a plain BlockSpec if the installed API doesn't accept it.
    """
    buffered = getattr(pl, "Buffered", None)
    if n_buf is not None and buffered is not None:
        try:
            return pl.BlockSpec(shape, index_map, pipeline_mode=buffered(n_buf))
        except TypeError:
            pass
    return pl.BlockSpec(shape, index_map)


def _layer_norm_f32(h, g_ref, b_ref):
    mean = jnp.mean(h, axis=-1, keepdims=True)
    cent = h - mean
    var = jnp.mean(cent * cent, axis=-1, keepdims=True)
    hn = cent * jax.lax.rsqrt(var + EPS)
    return hn * g_ref[...].astype(jnp.float32) + b_ref[...].astype(jnp.float32)


# ----------------------------------------------------------------------------
# pre-norm:  out = x + (dropout(LN(x)) @ W + bias)
# grid = (row tiles, weight output-column tiles)
# ----------------------------------------------------------------------------
def _pre_norm_kernel(*refs, n_block, full_width, has_mask, has_scratch):
    if has_scratch:
        *refs, h_ref = refs
    else:
        h_ref = None
    if has_mask:
        x_ref, m_ref, g_ref, b_ref, w_ref, bias_ref, o_ref = refs
    else:
        x_ref, g_ref, b_ref, w_ref, bias_ref, o_ref = refs
        m_ref = None

    j = pl.program_id(1)

    def ln_drop():
        h = _layer_norm_f32(x_ref[...].astype(jnp.float32), g_ref, b_ref)
        if m_ref is not None:
            h = h * m_ref[...].astype(jnp.float32)
        return h

    if h_ref is None:
        # Full-width weight: no VMEM round trip, feed LN result straight to MXU.
        h = ln_drop().astype(w_ref.dtype)
    else:
        # Streamed weight: cache dropout(LN(x)) once per row tile, reuse over j.
        @pl.when(j == 0)
        def _():
            h_ref[...] = ln_drop().astype(h_ref.dtype)

        h = h_ref[...]

    y = jnp.dot(h, w_ref[...], preferred_element_type=jnp.float32)
    y = y + bias_ref[...].astype(jnp.float32)

    if full_width:
        x_res = x_ref[...]
    else:
        # Residual slab sliced from the resident full-width x tile (no extra
        # HBM read of x for the residual add).
        x_res = x_ref[:, pl.ds(j * n_block, n_block)]
    o_ref[...] = (x_res.astype(jnp.float32) + y).astype(o_ref.dtype)


# ----------------------------------------------------------------------------
# post-norm:  out = x + dropout(LN(x @ W + bias))
# grid = (row tiles, weight input-row (K) tiles); f32 accumulator when nk > 1.
# ----------------------------------------------------------------------------
def _post_norm_kernel(*refs, k_block, full_width, has_mask, has_acc):
    if has_acc:
        *refs, acc_ref = refs
    else:
        acc_ref = None
    if has_mask:
        x_ref, m_ref, g_ref, b_ref, w_ref, bias_ref, o_ref = refs
    else:
        x_ref, g_ref, b_ref, w_ref, bias_ref, o_ref = refs
        m_ref = None

    k = pl.program_id(1)
    nk = pl.num_programs(1)

    if full_width:
        xs = x_ref[...]
    else:
        xs = x_ref[:, pl.ds(k * k_block, k_block)]
    part = jnp.dot(xs.astype(w_ref.dtype), w_ref[...],
                   preferred_element_type=jnp.float32)

    def finalize(acc):
        y = acc + bias_ref[...].astype(jnp.float32)
        y = _layer_norm_f32(y, g_ref, b_ref)
        if m_ref is not None:
            y = y * m_ref[...].astype(jnp.float32)
        o_ref[...] = (x_ref[...].astype(jnp.float32) + y).astype(o_ref.dtype)

    if acc_ref is None:
        finalize(part)
    else:
        @pl.when(k == 0)
        def _():
            acc_ref[...] = jnp.zeros_like(acc_ref)

        acc_ref[...] += part

        @pl.when(k == nk - 1)
        def _():
            finalize(acc_ref[...])


# ----------------------------------------------------------------------------
# Wrapper
# ----------------------------------------------------------------------------
def residual_connection(x, gamma, beta, w, bias, *, seed=0, pre_norm=True,
                        training=False, dropout_p=0.1, dropout_mask=None,
                        block_rows=None, n_block=None):
    """x: (B, S, D). gamma/beta/bias: (D,). w: (D, D) stored as (in, out)."""
    B, S, D = x.shape
    R = B * S
    assert D % 128 == 0, "embed_dim must be lane-aligned (multiple of 128)"

    ib, iw, ob = x.dtype.itemsize, w.dtype.itemsize, x.dtype.itemsize

    # Device VMEM capacity (per core).  Fallback is v7x-safe (64 MiB).
    try:
        vmem_cap = int(pltpu.get_tpu_info().vmem_capacity_bytes)
    except Exception:
        vmem_cap = 64 << 20

    # Keep the whole (D, D) weight resident (single-buffered) if it uses at
    # most ~1/4 of VMEM; otherwise stream column (pre-norm) / row (post-norm)
    # slabs of it from HBM.
    w_bytes = D * D * iw
    resident = w_bytes <= max(vmem_cap // 4, 8 << 20)

    if n_block is None:
        n_block = D if resident else _pick_col_block(D, 256 if pre_norm else 512)
    assert D % n_block == 0 and n_block % 128 == 0
    full_width = (n_block == D)

    # Row tile: MXU-matched; bigger when the weight is streamed (weight HBM
    # traffic scales with the number of row tiles).  Ragged R is padded.
    if block_rows is None:
        block_rows = 256 if full_width else 512
    block_rows = _round_up(max(8, min(block_rows, _round_up(R, 8))), 8)
    R_pad = _round_up(R, block_rows)

    x2 = x.reshape(R, D)
    if R_pad != R:
        x2 = jnp.pad(x2, ((0, R_pad - R), (0, 0)))

    use_mask = training and dropout_p > 0.0
    operands = [x2]
    if use_mask:
        if dropout_mask is None:
            keep = jax.random.bernoulli(jax.random.PRNGKey(seed),
                                        1.0 - dropout_p, (R_pad, D))
            mask = keep.astype(jnp.float32) / jnp.float32(1.0 - dropout_p)
        else:
            mask = jnp.asarray(dropout_mask, jnp.float32).reshape(R, D)
            if R_pad != R:
                mask = jnp.pad(mask, ((0, R_pad - R), (0, 0)))
        operands.append(mask)

    g2 = gamma.reshape(1, D)
    b2 = beta.reshape(1, D)
    bias2 = bias.reshape(1, D)

    n_w_buf = 1 if full_width else None  # constant block index -> single buffer

    in_specs = [pl.BlockSpec((block_rows, D), lambda i, j: (i, 0))]  # x (full width)
    if use_mask:
        in_specs.append(pl.BlockSpec((block_rows, D), lambda i, j: (i, 0)))
    in_specs += [
        _bspec((1, D), lambda i, j: (0, 0), n_buf=1),  # gamma
        _bspec((1, D), lambda i, j: (0, 0), n_buf=1),  # beta
    ]

    if pre_norm:
        nn = D // n_block
        in_specs += [
            _bspec((D, n_block), lambda i, j: (0, j), n_buf=n_w_buf),  # W slab
            _bspec((1, n_block), lambda i, j: (0, j), n_buf=n_w_buf),  # bias slab
        ]
        out_spec = pl.BlockSpec((block_rows, n_block), lambda i, j: (i, j))
        grid = (R_pad // block_rows, nn)
        scratch = [] if nn == 1 else [pltpu.VMEM((block_rows, D), w.dtype)]
        kernel = functools.partial(
            _pre_norm_kernel, n_block=n_block, full_width=full_width,
            has_mask=use_mask, has_scratch=bool(scratch))
        need = (2 * block_rows * D * ib
                + (2 * block_rows * D * 4 if use_mask else 0)
                + (1 if full_width else 2) * D * n_block * iw
                + 2 * block_rows * n_block * ob
                + (0 if nn == 1 else block_rows * D * iw)
                + 8 * D * 4)
    else:
        k_block = n_block
        nk = D // k_block
        in_specs += [
            _bspec((k_block, D), lambda i, k: (k, 0), n_buf=n_w_buf),  # W row slab
            _bspec((1, D), lambda i, k: (0, 0), n_buf=1),              # bias
        ]
        out_spec = pl.BlockSpec((block_rows, D), lambda i, k: (i, 0))
        grid = (R_pad // block_rows, nk)
        scratch = [] if nk == 1 else [pltpu.VMEM((block_rows, D), jnp.float32)]
        kernel = functools.partial(
            _post_norm_kernel, k_block=k_block, full_width=full_width,
            has_mask=use_mask, has_acc=bool(scratch))
        need = (2 * block_rows * D * ib
                + (2 * block_rows * D * 4 if use_mask else 0)
                + (1 if full_width else 2) * k_block * D * iw
                + 2 * block_rows * D * ob
                + (0 if nk == 1 else block_rows * D * 4)
                + 8 * D * 4)

    operands += [g2, b2, w, bias2]

    vmem_limit = int(min(max(int(1.3 * need) + (2 << 20), 16 << 20),
                         max(vmem_cap - (4 << 20), 16 << 20)))

    grid_spec = pltpu.PrefetchScalarGridSpec(
        num_scalar_prefetch=0,
        grid=grid,
        in_specs=in_specs,
        out_specs=out_spec,
        scratch_shapes=scratch)

    # NOTE: if the caller can donate x, input_output_aliases={0: 0} would drop
    # the extra full-size HBM output allocation (footprint win only).
    out = pl.pallas_call(
        kernel,
        out_shape=jax.ShapeDtypeStruct((R_pad, D), x.dtype),
        grid_spec=grid_spec,
        compiler_params=pltpu.CompilerParams(
            dimension_semantics=("parallel", "arbitrary"),
            vmem_limit_bytes=vmem_limit),
    )(*operands)

    return out[:R].reshape(B, S, D)


# ----------------------------------------------------------------------------
# Pure-JAX reference
# ----------------------------------------------------------------------------
def _reference(x, gamma, beta, w, bias, *, pre_norm=True, mask=None):
    xf = x.astype(jnp.float32)
    wf = w.astype(jnp.float32)
    bf = bias.astype(jnp.float32)
    gf = gamma.astype(jnp.float32)
    btf = beta.astype(jnp.float32)

    def ln(h):
        mean = jnp.mean(h, axis=-1, keepdims=True)
        var = jnp.mean((h - mean) ** 2, axis=-1, keepdims=True)
        return (h - mean) * jax.lax.rsqrt(var + EPS) * gf + btf

    def drop(h):
        return h if mask is None else h * mask.reshape(h.shape)

    mm = lambda h: jnp.einsum("bsd,de->bse", h, wf,
                              precision=jax.lax.Precision.HIGHEST) + bf
    y = mm(drop(ln(xf))) if pre_norm else drop(ln(mm(xf)))
    return (xf + y).astype(x.dtype)


if __name__ == "__main__":
    B, S, D = 2, 256, 256

    key = jax.random.PRNGKey(0)
    kx, kw, kb = jax.random.split(key, 3)

    x = jax.random.normal(kx, (B, S, D), dtype=jnp.float32)
    gamma = jnp.ones((D,), dtype=jnp.float32)           # PyTorch LayerNorm default init
    beta = jnp.zeros((D,), dtype=jnp.float32)
    w = jax.random.normal(kw, (D, D), dtype=jnp.float32) / jnp.sqrt(D)   # (in, out)
    bias = jax.random.normal(kb, (D,), dtype=jnp.float32) * 0.01

    # 1) pre-norm, eval: resident single-buffered weight, 256-row MXU tiles.
    out = jax.block_until_ready(residual_connection(x, gamma, beta, w, bias))
    ref = _reference(x, gamma, beta, w, bias, pre_norm=True)
    assert jnp.allclose(out, ref, atol=1e-4, rtol=1e-4), "pre-norm mismatch"

    # 2) forced weight N-tiling (streamed-weight path, LN cached in scratch).
    out_t = jax.block_until_ready(
        residual_connection(x, gamma, beta, w, bias, block_rows=128, n_block=128))
    assert jnp.allclose(out_t, ref, atol=1e-4, rtol=1e-4), "tiled-weight mismatch"

    # 3) post-norm, resident weight.
    out_pn = jax.block_until_ready(
        residual_connection(x, gamma, beta, w, bias, pre_norm=False))
    ref_pn = _reference(x, gamma, beta, w, bias, pre_norm=False)
    assert jnp.allclose(out_pn, ref_pn, atol=1e-4, rtol=1e-4), "post-norm mismatch"

    # 3b) post-norm with K-tiled weight streaming (exercises the accumulator path).
    out_pk = jax.block_until_ready(
        residual_connection(x, gamma, beta, w, bias, pre_norm=False, n_block=128))
    assert jnp.allclose(out_pk, ref_pn, atol=1e-4, rtol=1e-4), "post-norm K-tiled mismatch"

    # 4) bf16 activations / weights: native bf16 MXU operands, f32 LN stats.
    xb, wb, biasb = x.astype(jnp.bfloat16), w.astype(jnp.bfloat16), bias.astype(jnp.bfloat16)
    out_bf = jax.block_until_ready(residual_connection(xb, gamma, beta, wb, biasb))
    ref_bf = _reference(xb, gamma, beta, wb, biasb, pre_norm=True)
    assert jnp.allclose(out_bf.astype(jnp.float32), ref_bf.astype(jnp.float32),
                        atol=7e-2, rtol=7e-2), "bf16 mismatch"

    # 5) training-mode dropout with a deterministic host-generated mask.
    p = 0.1
    keep = jax.random.bernoulli(jax.random.PRNGKey(123), 1.0 - p, (B * S, D))
    mask = keep.astype(jnp.float32) / jnp.float32(1.0 - p)
    out_tr = jax.block_until_ready(
        residual_connection(x, gamma, beta, w, bias, training=True,
                            dropout_p=p, dropout_mask=mask))
    ref_tr = _reference(x, gamma, beta, w, bias, pre_norm=True,
                        mask=mask.reshape(B, S, D))
    assert jnp.allclose(out_tr, ref_tr, atol=1e-3, rtol=1e-3), "dropout mismatch"

    # 6) ragged row count (exercises the padding path).
    xr = x[:, :250, :]
    out_r = jax.block_until_ready(residual_connection(xr, gamma, beta, w, bias))
    ref_r = _reference(xr, gamma, beta, w, bias, pre_norm=True)
    assert jnp.allclose(out_r, ref_r, atol=1e-4, rtol=1e-4), "ragged-rows mismatch"

    print("KERNEL_OK")
</pallas_src>

<mosaic_0001>
module attributes {stable_mosaic.version = 11 : i64} {
  func.func @_pre_norm_kernel(%arg0: i32, %arg1: i32, %arg2: memref<256x256xf32, #tpu.memory_space<vmem>>, %arg3: memref<1x256xf32, #tpu.memory_space<vmem>>, %arg4: memref<1x256xf32, #tpu.memory_space<vmem>>, %arg5: memref<256x256xf32, #tpu.memory_space<vmem>>, %arg6: memref<1x256xf32, #tpu.memory_space<vmem>>, %arg7: memref<256x256xf32, #tpu.memory_space<vmem>>) attributes {dimension_semantics = [#tpu.dimension_semantics<parallel>, #tpu.dimension_semantics<arbitrary>], iteration_bounds = array<i64: 2, 1>, scalar_prefetch = 0 : i64, scratch_operands = 0 : i64, tpu.core_type = #tpu.core_type<tc>, window_params = [{transform_indices = @transform_0, window_bounds = array<i64: 256, 256>}, {pipeline_mode = #tpu.pipeline_mode<synchronous>, transform_indices = @transform_1, window_bounds = array<i64: 1, 256>}, {pipeline_mode = #tpu.pipeline_mode<synchronous>, transform_indices = @transform_2, window_bounds = array<i64: 1, 256>}, {pipeline_mode = #tpu.pipeline_mode<synchronous>, transform_indices = @transform_3, window_bounds = array<i64: 256, 256>}, {pipeline_mode = #tpu.pipeline_mode<synchronous>, transform_indices = @transform_4, window_bounds = array<i64: 1, 256>}, {transform_indices = @transform_5, window_bounds = array<i64: 256, 256>}]} {
    %c0 = arith.constant 0 : index
    %c0_0 = arith.constant 0 : index
    %0 = vector.load %arg2[%c0, %c0_0] : memref<256x256xf32, #tpu.memory_space<vmem>>, vector<256x256xf32>
    %cst = arith.constant dense<0.000000e+00> : vector<256xf32>
    %1 = vector.multi_reduction <add>, %0, %cst [1] : vector<256x256xf32> to vector<256xf32>
    %2 = vector.shape_cast %1 : vector<256xf32> to vector<256x1xf32>
    %cst_1 = arith.constant 2.560000e+02 : f32
    %3 = vector.broadcast %cst_1 : f32 to vector<256x1xf32>
    %4 = arith.divf %2, %3 : vector<256x1xf32>
    %5 = vector.broadcast %4 : vector<256x1xf32> to vector<256x256xf32>
    %6 = arith.subf %0, %5 : vector<256x256xf32>
    %7 = arith.mulf %6, %6 : vector<256x256xf32>
    %cst_2 = arith.constant dense<0.000000e+00> : vector<256xf32>
    %8 = vector.multi_reduction <add>, %7, %cst_2 [1] : vector<256x256xf32> to vector<256xf32>
    %9 = vector.shape_cast %8 : vector<256xf32> to vector<256x1xf32>
    %cst_3 = arith.constant 2.560000e+02 : f32
    %10 = vector.broadcast %cst_3 : f32 to vector<256x1xf32>
    %11 = arith.divf %9, %10 : vector<256x1xf32>
    %cst_4 = arith.constant 9.99999974E-6 : f32
    %12 = vector.broadcast %cst_4 : f32 to vector<256x1xf32>
    %13 = arith.addf %11, %12 : vector<256x1xf32>
    %14 = math.rsqrt %13 : vector<256x1xf32>
    %15 = vector.broadcast %14 : vector<256x1xf32> to vector<256x256xf32>
    %16 = arith.mulf %6, %15 : vector<256x256xf32>
    %c0_5 = arith.constant 0 : index
    %c0_6 = arith.constant 0 : index
    %17 = vector.load %arg3[%c0_5, %c0_6] : memref<1x256xf32, #tpu.memory_space<vmem>>, vector<1x256xf32>
    %18 = vector.broadcast %17 : vector<1x256xf32> to vector<256x256xf32>
    %19 = arith.mulf %16, %18 : vector<256x256xf32>
    %c0_7 = arith.constant 0 : index
    %c0_8 = arith.constant 0 : index
    %20 = vector.load %arg4[%c0_7, %c0_8] : memref<1x256xf32, #tpu.memory_space<vmem>>, vector<1x256xf32>
    %21 = vector.broadcast %20 : vector<1x256xf32> to vector<256x256xf32>
    %22 = arith.addf %19, %21 : vector<256x256xf32>
    %c0_9 = arith.constant 0 : index
    %c0_10 = arith.constant 0 : index
    %23 = vector.load %arg5[%c0_9, %c0_10] : memref<256x256xf32, #tpu.memory_space<vmem>>, vector<256x256xf32>
    %cst_11 = arith.constant dense<0.000000e+00> : vector<256x256xf32>
    %24 = tpu.matmul %22, %23, %cst_11 {dimension_numbers = #tpu.dot_dimension_numbers<[1], [0], [0], [1], [0, 0, 1, 1], [], []>} : vector<256x256xf32>, vector<256x256xf32>, vector<256x256xf32> -> vector<256x256xf32>
    %c0_12 = arith.constant 0 : index
    %c0_13 = arith.constant 0 : index
    %25 = vector.load %arg6[%c0_12, %c0_13] : memref<1x256xf32, #tpu.memory_space<vmem>>, vector<1x256xf32>
    %26 = vector.broadcast %25 : vector<1x256xf32> to vector<256x256xf32>
    %27 = arith.addf %24, %26 : vector<256x256xf32>
    %c0_14 = arith.constant 0 : index
    %c0_15 = arith.constant 0 : index
    %28 = vector.load %arg2[%c0_14, %c0_15] : memref<256x256xf32, #tpu.memory_space<vmem>>, vector<256x256xf32>
    %29 = arith.addf %28, %27 : vector<256x256xf32>
    %c0_16 = arith.constant 0 : index
    %c0_17 = arith.constant 0 : index
    %30 = vector.load %arg7[%c0_16, %c0_17] : memref<256x256xf32, #tpu.memory_space<vmem>>, vector<256x256xf32>
    tpu.vector_store %arg7[%c0_16, %c0_17], %29 {strides = array<i32>} : memref<256x256xf32, #tpu.memory_space<vmem>>, vector<256x256xf32>,
    return
  }
  func.func @transform_0(%arg0: i32, %arg1: i32) -> (i32, i32) {
    %c0_i32 = arith.constant 0 : i32
    %c0_i32_0 = arith.constant 0 : i32
    return %arg0, %c0_i32 : i32, i32
  }
  func.func @transform_1(%arg0: i32, %arg1: i32) -> (i32, i32) {
    %c0_i32 = arith.constant 0 : i32
    %c0_i32_0 = arith.constant 0 : i32
    %c0_i32_1 = arith.constant 0 : i32
    return %c0_i32, %c0_i32_0 : i32, i32
  }
  func.func @transform_2(%arg0: i32, %arg1: i32) -> (i32, i32) {
    %c0_i32 = arith.constant 0 : i32
    %c0_i32_0 = arith.constant 0 : i32
    %c0_i32_1 = arith.constant 0 : i32
    return %c0_i32, %c0_i32_0 : i32, i32
  }
  func.func @transform_3(%arg0: i32, %arg1: i32) -> (i32, i32) {
    %c0_i32 = arith.constant 0 : i32
    %c0_i32_0 = arith.constant 0 : i32
    return %c0_i32, %arg1 : i32, i32
  }
  func.func @transform_4(%arg0: i32, %arg1: i32) -> (i32, i32) {
    %c0_i32 = arith.constant 0 : i32
    %c0_i32_0 = arith.constant 0 : i32
    return %c0_i32, %arg1 : i32, i32
  }
  func.func @transform_5(%arg0: i32, %arg1: i32) -> (i32, i32) {
    %c0_i32 = arith.constant 0 : i32
    return %arg0, %arg1 : i32, i32
  }
}

</mosaic_0001>

<llo_original>
// kernel: tpu_custom_call.1
$region0: #{tpu_custom_call.1}
  #allocation0 [shape = 'u32[]', space=smem, size = 0x4, offset = 0x4, fixed_abs, tag = 'smem constant byte address 0x4 - core index']
  #allocation1 [shape = 'u32[72,128]{1,0:T(1,128)}', space=vmem, size = 0x9000, scoped, tag = 'internal scratch']
  %s0 = inlined_call_operand.hbm [shape: f32[512,256], index: 0, kind: input, shape index: {}]
  %s1 = inlined_call_operand.hbm [shape: f32[1,256], index: 1, kind: input, shape index: {}]
  %s2 = inlined_call_operand.hbm [shape: f32[1,256], index: 2, kind: input, shape index: {}]
  %s3 = inlined_call_operand.hbm [shape: f32[256,256], index: 3, kind: input, shape index: {}]
  %s4 = inlined_call_operand.vmem [shape: f32[1,256], index: 4, kind: input, shape index: {}]
  %s5 = inlined_call_operand.hbm [shape: f32[512,256], index: 5, kind: output, shape index: {}]
  %s6 = sld [smem:[#allocation0]]
  $region69: #{tpu_custom_call.1} parent=0
    _
  %s8 = ssub.s32 1, %s6
  %s9 = scalar_select 0, %s8, %s6
  $region1: #{tpu_custom_call.1} parent=0
    #allocation2 [shape = 'u8[524288]{0}', space=vmem, size = 0x80000, scoped, tag = 'input window, operand 0']
    #allocation3 [shape = 's32[2]{0}', space=sflag, size = 0x8, scoped, tag = 'scoped memory for tpu_custom_call.1']
    #allocation4 [shape = 's32[2]{0}', space=sflag, size = 0x8, scoped, tag = 'scoped memory for tpu_custom_call.1']
    #allocation5 [shape = 'u8[1024]{0}', space=vmem, size = 0x400, scoped, tag = 'input window, operand 1, single buffered']
    #allocation6 [shape = 's32[1]{0}', space=sflag, size = 0x4, scoped, tag = 'scoped memory for tpu_custom_call.1']
    #allocation7 [shape = 'u8[1024]{0}', space=vmem, size = 0x400, scoped, tag = 'input window, operand 2, single buffered']
    #allocation8 [shape = 'u8[262144]{0}', space=vmem, size = 0x40000, scoped, tag = 'input window, operand 3, single buffered']
    #allocation9 [shape = 's32[1]{0}', space=sflag, size = 0x4, scoped, tag = 'scoped memory for tpu_custom_call.1']
    #allocation10 [shape = 'u8[524288]{0}', space=vmem, size = 0x80000, scoped, tag = 'output window, operand 0']
    %10 = vsyncpa [#allocation3], 0
    %s11 = scalar_lea.sflag [#allocation3], 1
    %12 = vsyncpa %s11, 0
    %13 = vsyncpa [#allocation6], 0
    %14 = vsyncpa [#allocation9], 0
    %15 = vsyncpa [#allocation4], 0
    %s16 = scalar_lea.sflag [#allocation4], 1
    %17 = vsyncpa %s16, 0
    loop: start=0, step=1, limit=4
    $region2: #{tpu_custom_call.1} parent=1 // loop_pre_header
      _
    $region3: #{tpu_custom_call.1} parent=1 // loop_header
      %s19 = sphi 0, %s23
      %p20 = scmp.ge.s32.totalorder %s19, 4
      %s26 = sphi 0, %s38
      %s27 = sphi 0, %s34
      %s28 = sphi 0, %s26
      %s29 = sphi 0, %s27
      %s30 = sphi 0, %s28
      %s31 = sphi 0, %s29
      %s41 = sphi 0, %s43
      %s44 = sphi 0, %s41
      %s45 = sphi 0, %s44
      %s61 = sphi 0, %s45
      %s65 = sphi 0, %s65
      %s67 = sphi 0, %s65
      %s68 = sphi 0, %s67
      %s82 = sphi 0, %s68
      %s86 = sphi 0, %s86
      %s88 = sphi 0, %s86
      %s89 = sphi 0, %s88
      %s103 = sphi 0, %s89
      %s109 = sphi 0, %s111
      %s112 = sphi 0, %s109
      %s113 = sphi 0, %s112
      %s129 = sphi 0, %s113
      %s135 = sphi 0, %s137
      %s138 = sphi 0, %s135
      %s139 = sphi 0, %s138
      %s155 = sphi 0, %s139
      %s163 = sphi 0, %s165
      %s166 = sphi 0, %s163
      %s167 = sphi 0, %s166
      %s183 = sphi 0, %s167
    $region4: #{tpu_custom_call.1} parent=1 // loop_header_branch
      %22 = sbr.rel (%p20) target = $region8
    $region5: #{tpu_custom_call.1} parent=1 // loop_body
      %s24 = ssub.s32 %s19, 1
      %s25 = ssub.s32 %s19, 2
      %s32 = sadd.s32 1, %s27
      %p33 = scmp.ge.s32.totalorder %s32, 1
      %s34 = scalar_select %p33, 0, %s32
      %s35 = sadd.s32 1, %s26
      %s36 = scalar_select %p33, %s35, %s26
      %p37 = scmp.ge.s32.totalorder %s36, 2
      %s38 = scalar_select %p37, 0, %s36
      %s39 = ssub.s32 %s26, %s38
      %p40 = scmp.eq.s32.totalorder %s39, 0
      %s42 = sadd.s32 %s41, 1
      %s43 = scalar_select %p40, %s41, %s42
      %p46 = pneg %p40
      %p47 = scmp.eq.s32.totalorder %s19, 1
      %p48 = por %p46, %p47
      %p49 = scmp.ne.s32.totalorder %s41, %s44
      %p50 = scmp.eq.s32.totalorder %s19, 0
      %p51 = por %p49, %p50
      %p52 = scmp.ne.s32.totalorder %s41, %s44
      %p53 = scmp.eq.s32.totalorder %s24, 1
      %p54 = por %p52, %p53
      %p55 = scmp.ne.s32.totalorder %s44, %s45
      %p56 = scmp.eq.s32.totalorder %s24, 0
      %p57 = por %p55, %p56
      %p58 = scmp.ne.s32.totalorder %s44, %s45
      %p59 = scmp.eq.s32.totalorder %s25, 1
      %p60 = por %p58, %p59
      %p62 = scmp.ne.s32.totalorder %s45, %s61
      %p63 = scmp.eq.s32.totalorder %s25, 0
      %p64 = por %p62, %p63
      %s66 = sadd.s32 %s65, 1
      %p69 = scmp.eq.s32.totalorder %s19, 1
      %p70 = scmp.ne.s32.totalorder %s65, %s67
      %p71 = scmp.eq.s32.totalorder %s19, 0
      %p72 = por %p70, %p71
      %p73 = scmp.ne.s32.totalorder %s65, %s67
      %p74 = scmp.eq.s32.totalorder %s24, 1
      %p75 = por %p73, %p74
      %p76 = scmp.ne.s32.totalorder %s67, %s68
      %p77 = scmp.eq.s32.totalorder %s24, 0
      %p78 = por %p76, %p77
      %p79 = scmp.ne.s32.totalorder %s67, %s68
      %p80 = scmp.eq.s32.totalorder %s25, 1
      %p81 = por %p79, %p80
      %p83 = scmp.ne.s32.totalorder %s68, %s82
      %p84 = scmp.eq.s32.totalorder %s25, 0
      %p85 = por %p83, %p84
      %s87 = sadd.s32 %s86, 1
      %p90 = scmp.eq.s32.totalorder %s19, 1
      %p91 = scmp.ne.s32.totalorder %s86, %s88
      %p92 = scmp.eq.s32.totalorder %s19, 0
      %p93 = por %p91, %p92
      %p94 = scmp.ne.s32.totalorder %s86, %s88
      %p95 = scmp.eq.s32.totalorder %s24, 1
      %p96 = por %p94, %p95
      %p97 = scmp.ne.s32.totalorder %s88, %s89
      %p98 = scmp.eq.s32.totalorder %s24, 0
      %p99 = por %p97, %p98
      %p100 = scmp.ne.s32.totalorder %s88, %s89
      %p101 = scmp.eq.s32.totalorder %s25, 1
      %p102 = por %p100, %p101
      %p104 = scmp.ne.s32.totalorder %s89, %s103
      %p105 = scmp.eq.s32.totalorder %s25, 0
      %p106 = por %p104, %p105
      %s107 = ssub.s32 %s27, %s34
      %p108 = scmp.eq.s32.totalorder %s107, 0
      %s110 = sadd.s32 %s109, 1
      %s111 = scalar_select %p108, %s109, %s110
      %p114 = pneg %p108
      %p115 = scmp.eq.s32.totalorder %s19, 1
      %p116 = por %p114, %p115
      %p117 = scmp.ne.s32.totalorder %s109, %s112
      %p118 = scmp.eq.s32.totalorder %s19, 0
      %p119 = por %p117, %p118
      %p120 = scmp.ne.s32.totalorder %s109, %s112
      %p121 = scmp.eq.s32.totalorder %s24, 1
      %p122 = por %p120, %p121
      %p123 = scmp.ne.s32.totalorder %s112, %s113
      %p124 = scmp.eq.s32.totalorder %s24, 0
      %p125 = por %p123, %p124
      %p126 = scmp.ne.s32.totalorder %s112, %s113
      %p127 = scmp.eq.s32.totalorder %s25, 1
      %p128 = por %p126, %p127
      %p130 = scmp.ne.s32.totalorder %s113, %s129
      %p131 = scmp.eq.s32.totalorder %s25, 0
      %p132 = por %p130, %p131
      %s133 = ssub.s32 %s27, %s34
      %p134 = scmp.eq.s32.totalorder %s133, 0
      %s136 = sadd.s32 %s135, 1
      %s137 = scalar_select %p134, %s135, %s136
      %p140 = pneg %p134
      %p141 = scmp.eq.s32.totalorder %s19, 1
      %p142 = por %p140, %p141
      %p143 = scmp.ne.s32.totalorder %s135, %s138
      %p144 = scmp.eq.s32.totalorder %s19, 0
      %p145 = por %p143, %p144
      %p146 = scmp.ne.s32.totalorder %s135, %s138
      %p147 = scmp.eq.s32.totalorder %s24, 1
      %p148 = por %p146, %p147
      %p149 = scmp.ne.s32.totalorder %s138, %s139
      %p150 = scmp.eq.s32.totalorder %s24, 0
      %p151 = por %p149, %p150
      %p152 = scmp.ne.s32.totalorder %s138, %s139
      %p153 = scmp.eq.s32.totalorder %s25, 1
      %p154 = por %p152, %p153
      %p156 = scmp.ne.s32.totalorder %s139, %s155
      %p157 = scmp.eq.s32.totalorder %s25, 0
      %p158 = por %p156, %p157
      %s159 = ssub.s32 %s26, %s38
      %s160 = ssub.s32 %s27, %s34
      %s161 = sor.u32 %s159, %s160
      %p162 = scmp.eq.s32.totalorder %s161, 0
      %s164 = sadd.s32 %s163, 1
      %s165 = scalar_select %p162, %s163, %s164
      %p168 = pneg %p162
      %p169 = scmp.eq.s32.totalorder %s19, 1
      %p170 = por %p168, %p169
      %p171 = scmp.ne.s32.totalorder %s163, %s166
      %p172 = scmp.eq.s32.totalorder %s19, 0
      %p173 = por %p171, %p172
      %p174 = scmp.ne.s32.totalorder %s163, %s166
      %p175 = scmp.eq.s32.totalorder %s24, 1
      %p176 = por %p174, %p175
      %p177 = scmp.ne.s32.totalorder %s166, %s167
      %p178 = scmp.eq.s32.totalorder %s24, 0
      %p179 = por %p177, %p178
      %p180 = scmp.ne.s32.totalorder %s166, %s167
      %p181 = scmp.eq.s32.totalorder %s25, 1
      %p182 = por %p180, %p181
      %p184 = scmp.ne.s32.totalorder %s167, %s183
      %p185 = scmp.eq.s32.totalorder %s25, 0
      %p186 = por %p184, %p185
      %p187 = scmp.le.s32.totalorder 1, %s19
      %p188 = scmp.lt.s32.totalorder %s19, 3
      %p189 = pnand %p187, %p188
      %p190 = pneg %p189
      // Predicated region
      $region9: #{tpu_custom_call.1} parent=5 // pred_check
        _
      $region10: #{tpu_custom_call.1} parent=5 // pred_check_branch
        %192 = sbr.rel (%p189) target = $region12
      $region11: #{tpu_custom_call.1} parent=5 // pred_region
        %s193 = ssub.s32 %s19, 1
        // Predicated region
        $region13: #{tpu_custom_call.1} parent=11 // pred_check
          %p194 = pneg %p78
        $region14: #{tpu_custom_call.1} parent=11 // pred_check_branch
          %196 = sbr.rel (%p194) target = $region16
        $region15: #{tpu_custom_call.1} parent=11 // pred_region
          %198 = vsyncadd [#allocation6], 0
          %s200 = sshll.u32 %s1, 4
          %s201 = int_to_ptr.hbm [resolvable:$true] %s200
          %s202 = sshll.u32 [#allocation5], 4
          %s203 = int_to_ptr.vmem [resolvable:$true] %s202
          %205 = dma.hbm_to_vmem [thread:$0]  %s201, 32, %s203, [#allocation6]
        $region16: #{tpu_custom_call.1} parent=11 // pred_fallthru
          _
        // Predicated region
        $region17: #{tpu_custom_call.1} parent=11 // pred_check
          %p206 = pneg %p99
        $region18: #{tpu_custom_call.1} parent=11 // pred_check_branch
          %208 = sbr.rel (%p206) target = $region20
        $region19: #{tpu_custom_call.1} parent=11 // pred_region
          %210 = vsyncadd [#allocation6], 0
          %s212 = sshll.u32 %s2, 4
          %s213 = int_to_ptr.hbm [resolvable:$true] %s212
          %s214 = sshll.u32 [#allocation7], 4
          %s215 = int_to_ptr.vmem [resolvable:$true] %s214
          %217 = dma.hbm_to_vmem [thread:$0]  %s213, 32, %s215, [#allocation6]
        $region20: #{tpu_custom_call.1} parent=11 // pred_fallthru
          _
        // Predicated region
        $region21: #{tpu_custom_call.1} parent=11 // pred_check
          %p218 = pneg %p125
        $region22: #{tpu_custom_call.1} parent=11 // pred_check_branch
          %220 = sbr.rel (%p218) target = $region24
        $region23: #{tpu_custom_call.1} parent=11 // pred_region
          %s221 = smul.u32 2, %s29
          %223 = vsyncadd [#allocation9], 0
          %s224 = smul.addr %s221, 8
          %s225 = scalar_lea.hbm %s3, %s224
          %s226 = sshll.u32 %s225, 4
          %s227 = int_to_ptr.hbm [resolvable:$true] %s226
          %s228 = sshll.u32 [#allocation8], 4
          %s229 = int_to_ptr.vmem [resolvable:$true] %s228
          %234 = dma.hbm_to_vmem [thread:$0]  %s227, 8192, %s229, [#allocation9], 256, 256, 16
        $region24: #{tpu_custom_call.1} parent=11 // pred_fallthru
          _
        // Predicated region
        $region25: #{tpu_custom_call.1} parent=11 // pred_check
          %p235 = pneg %p151
        $region26: #{tpu_custom_call.1} parent=11 // pred_check_branch
          %237 = sbr.rel (%p235) target = $region28
        $region27: #{tpu_custom_call.1} parent=11 // pred_region
          %s238 = smul.u32 2, %s29
          %p239 = scmp.lt.s32.totalorder %s238, 1
          %s240 = scalar_select %p239, %s238, 1
          %s241 = scalar_lea.vmem %s4, %s240
          %s242 = smul.u32 2, %s29
        $region28: #{tpu_custom_call.1} parent=11 // pred_fallthru
          _
      $region12: #{tpu_custom_call.1} parent=5 // pred_fallthru
        _
      %p243 = scmp.lt.s32.totalorder %s19, 2
      // Predicated region
      $region29: #{tpu_custom_call.1} parent=5 // pred_check
        %p244 = pneg %p243
      $region30: #{tpu_custom_call.1} parent=5 // pred_check_branch
        %246 = sbr.rel (%p244) target = $region32
      $region31: #{tpu_custom_call.1} parent=5 // pred_region
        // Predicated region
        $region33: #{tpu_custom_call.1} parent=31 // pred_check
          %p247 = pneg %p51
        $region34: #{tpu_custom_call.1} parent=31 // pred_check_branch
          %249 = sbr.rel (%p247) target = $region36
        $region35: #{tpu_custom_call.1} parent=31 // pred_region
          %s250 = sand.u32 %s41, 1
          %s251 = scalar_lea.sflag [#allocation3], %s250
          %s252 = sand.u32 %s41, 1
          %s253 = smul.addr %s252, 512
          %s254 = scalar_lea.vmem [#allocation2], %s253
          %s255 = smul.u32 32, %s26
          %257 = vsyncadd %s251, 0
          %s258 = smul.addr %s255, 2
          %s259 = smul.addr %s258, 8
          %s260 = scalar_lea.hbm %s0, %s259
          %s261 = sshll.u32 %s260, 4
          %s262 = int_to_ptr.hbm [resolvable:$true] %s261
          %s263 = sshll.u32 %s254, 4
          %s264 = int_to_ptr.vmem [resolvable:$true] %s263
          %269 = dma.hbm_to_vmem [thread:$0]  %s262, 8192, %s264, %s251, 256, 256, 16
        $region36: #{tpu_custom_call.1} parent=31 // pred_fallthru
          _
      $region32: #{tpu_custom_call.1} parent=5 // pred_fallthru
        _
      %p270 = scmp.le.s32.totalorder 1, %s19
      %p271 = scmp.lt.s32.totalorder %s19, 3
      %p272 = pnand %p270, %p271
      %p273 = pneg %p272
      // Predicated region
      $region37: #{tpu_custom_call.1} parent=5 // pred_check
        _
      $region38: #{tpu_custom_call.1} parent=5 // pred_check_branch
        %275 = sbr.rel (%p272) target = $region40
      $region39: #{tpu_custom_call.1} parent=5 // pred_region
        %s276 = ssub.s32 %s19, 1
        %s277 = sand.u32 %s44, 1
        %s278 = scalar_lea.sflag [#allocation3], %s277
        %s279 = sand.u32 %s44, 1
        %s280 = smul.addr %s279, 512
        %s281 = scalar_lea.vmem [#allocation2], %s280
        // Predicated region
        $region41: #{tpu_custom_call.1} parent=39 // pred_check
          %p282 = pneg %p57
        $region42: #{tpu_custom_call.1} parent=39 // pred_check_branch
          %284 = sbr.rel (%p282) target = $region44
        $region43: #{tpu_custom_call.1} parent=39 // pred_region
          %286 = dma.done %s278, 8192
        $region44: #{tpu_custom_call.1} parent=39 // pred_fallthru
          _
        // Predicated region
        $region45: #{tpu_custom_call.1} parent=39 // pred_check
          %p287 = pneg %p78
        $region46: #{tpu_custom_call.1} parent=39 // pred_check_branch
          %289 = sbr.rel (%p287) target = $region48
        $region47: #{tpu_custom_call.1} parent=39 // pred_region
          %291 = dma.done [#allocation6], 32
        $region48: #{tpu_custom_call.1} parent=39 // pred_fallthru
          _
        // Predicated region
        $region49: #{tpu_custom_call.1} parent=39 // pred_check
          %p292 = pneg %p99
        $region50: #{tpu_custom_call.1} parent=39 // pred_check_branch
          %294 = sbr.rel (%p292) target = $region52
        $region51: #{tpu_custom_call.1} parent=39 // pred_region
          %296 = dma.done [#allocation6], 32
        $region52: #{tpu_custom_call.1} parent=39 // pred_fallthru
          _
        // Predicated region
        $region53: #{tpu_custom_call.1} parent=39 // pred_check
          %p297 = pneg %p125
        $region54: #{tpu_custom_call.1} parent=39 // pred_check_branch
          %299 = sbr.rel (%p297) target = $region56
        $region55: #{tpu_custom_call.1} parent=39 // pred_region
          %301 = dma.done [#allocation9], 8192
        $region56: #{tpu_custom_call.1} parent=39 // pred_fallthru
          _
        %s302 = sand.u32 %s44, 1
        %s303 = scalar_lea.sflag [#allocation3], %s302
        %s304 = sand.u32 %s44, 1
        %s305 = smul.addr %s304, 512
        %s306 = scalar_lea.vmem [#allocation2], %s305
        %p307 = pneg %p57
        %p308 = pneg %p54
        %p309 = pneg %p78
        %p310 = pneg %p75
        %p311 = pneg %p99
        %p312 = pneg %p96
        %p313 = pneg %p125
        %p314 = pneg %p122
        %s315 = smul.u32 2, %s29
        %p316 = scmp.lt.s32.totalorder %s315, 1
        %s317 = scalar_select %p316, %s315, 1
        %s318 = scalar_lea.vmem %s4, %s317
        %p319 = pneg %p151
        %p320 = pneg %p148
        %p321 = pneg %p179
        %p322 = pneg %p176
        %s323 = sand.u32 %s166, 1
        %s324 = scalar_lea.sflag [#allocation4], %s323
        %s325 = sand.u32 %s166, 1
        %s326 = smul.addr %s325, 512
        %s327 = scalar_lea.vmem [#allocation10], %s326
        %s328 = smul.u32 32, %s28
        %s329 = smul.u32 2, %s29
        %s330 = smul.u32 2, %s29
        %p331 = scmp.lt.s32.totalorder %s330, 1
        %s332 = scalar_select %p331, %s330, 1
        %s333 = scalar_lea.vmem %s4, %s332
        %s334 = smul.u32 2, %s29
        %s335 = smul.u32 32, %s28
        %s336 = smul.u32 2, %s29
        %v337 = vld [vmem:[%s281] sm:$0xff]
        %v338 = vld [vmem:[%s281 + $0x8] sm:$0xff]
        %v339 = vld [vmem:[%s281 + $0x10] sm:$0xff]
        %v340 = vld [vmem:[%s281 + $0x18] sm:$0xff]
        %v341 = vld [vmem:[%s281 + $0x20] sm:$0xff]
        %v342 = vld [vmem:[%s281 + $0x28] sm:$0xff]
        %v343 = vld [vmem:[%s281 + $0x30] sm:$0xff]
        %v344 = vld [vmem:[%s281 + $0x38] sm:$0xff]
        %v345 = vld [vmem:[%s281 + $0x40] sm:$0xff]
        %v346 = vld [vmem:[%s281 + $0x48] sm:$0xff]
        %v347 = vld [vmem:[%s281 + $0x50] sm:$0xff]
        %v348 = vld [vmem:[%s281 + $0x58] sm:$0xff]
        %v349 = vld [vmem:[%s281 + $0x60] sm:$0xff]
        %v350 = vld [vmem:[%s281 + $0x68] sm:$0xff]
        %v351 = vld [vmem:[%s281 + $0x70] sm:$0xff]
        %v352 = vld [vmem:[%s281 + $0x78] sm:$0xff]
        %v353 = vld [vmem:[%s281 + $0x80] sm:$0xff]
        %v354 = vld [vmem:[%s281 + $0x88] sm:$0xff]
        %v355 = vld [vmem:[%s281 + $0x90] sm:$0xff]
        %v356 = vld [vmem:[%s281 + $0x98] sm:$0xff]
        %v357 = vld [vmem:[%s281 + $0xa0] sm:$0xff]
        %v358 = vld [vmem:[%s281 + $0xa8] sm:$0xff]
        %v359 = vld [vmem:[%s281 + $0xb0] sm:$0xff]
        %v360 = vld [vmem:[%s281 + $0xb8] sm:$0xff]
        %v361 = vld [vmem:[%s281 + $0xc0] sm:$0xff]
        %v362 = vld [vmem:[%s281 + $0xc8] sm:$0xff]
        %v363 = vld [vmem:[%s281 + $0xd0] sm:$0xff]
        %v364 = vld [vmem:[%s281 + $0xd8] sm:$0xff]
        %v365 = vld [vmem:[%s281 + $0xe0] sm:$0xff]
        %v366 = vld [vmem:[%s281 + $0xe8] sm:$0xff]
        %v367 = vld [vmem:[%s281 + $0xf0] sm:$0xff]
        %v368 = vld [vmem:[%s281 + $0xf8] sm:$0xff]
        %v369 = vld [vmem:[%s281 + $0x100] sm:$0xff]
        %v370 = vld [vmem:[%s281 + $0x108] sm:$0xff]
        %v371 = vld [vmem:[%s281 + $0x110] sm:$0xff]
        %v372 = vld [vmem:[%s281 + $0x118] sm:$0xff]
        %v373 = vld [vmem:[%s281 + $0x120] sm:$0xff]
        %v374 = vld [vmem:[%s281 + $0x128] sm:$0xff]
        %v375 = vld [vmem:[%s281 + $0x130] sm:$0xff]
        %v376 = vld [vmem:[%s281 + $0x138] sm:$0xff]
        %v377 = vld [vmem:[%s281 + $0x140] sm:$0xff]
        %v378 = vld [vmem:[%s281 + $0x148] sm:$0xff]
        %v379 = vld [vmem:[%s281 + $0x150] sm:$0xff]
        %v380 = vld [vmem:[%s281 + $0x158] sm:$0xff]
        %v381 = vld [vmem:[%s281 + $0x160] sm:$0xff]
        %v382 = vld [vmem:[%s281 + $0x168] sm:$0xff]
        %v383 = vld [vmem:[%s281 + $0x170] sm:$0xff]
        %v384 = vld [vmem:[%s281 + $0x178] sm:$0xff]
        %v385 = vld [vmem:[%s281 + $0x180] sm:$0xff]
        %v386 = vld [vmem:[%s281 + $0x188] sm:$0xff]
        %v387 = vld [vmem:[%s281 + $0x190] sm:$0xff]
        %v388 = vld [vmem:[%s281 + $0x198] sm:$0xff]
        %v389 = vld [vmem:[%s281 + $0x1a0] sm:$0xff]
        %v390 = vld [vmem:[%s281 + $0x1a8] sm:$0xff]
        %v391 = vld [vmem:[%s281 + $0x1b0] sm:$0xff]
        %v392 = vld [vmem:[%s281 + $0x1b8] sm:$0xff]
        %v393 = vld [vmem:[%s281 + $0x1c0] sm:$0xff]
        %v394 = vld [vmem:[%s281 + $0x1c8] sm:$0xff]
        %v395 = vld [vmem:[%s281 + $0x1d0] sm:$0xff]
        %v396 = vld [vmem:[%s281 + $0x1d8] sm:$0xff]
        %v397 = vld [vmem:[%s281 + $0x1e0] sm:$0xff]
        %v398 = vld [vmem:[%s281 + $0x1e8] sm:$0xff]
        %v399 = vld [vmem:[%s281 + $0x1f0] sm:$0xff]
        %v400 = vld [vmem:[%s281 + $0x1f8] sm:$0xff]
        %v401 = vadd.f32 %v337, %v338
        %402 = vadd.xlane.f32.xlu0 %v401
        %v403 = vpop.xlane.xlu0 %402
        %v404 = vadd.f32 %v339, %v340
        %405 = vadd.xlane.f32.xlu0 %v404
        %v406 = vpop.xlane.xlu0 %405
        %v407 = vadd.f32 %v341, %v342
        %408 = vadd.xlane.f32.xlu0 %v407
        %v409 = vpop.xlane.xlu0 %408
        %v410 = vadd.f32 %v343, %v344
        %411 = vadd.xlane.f32.xlu0 %v410
        %v412 = vpop.xlane.xlu0 %411
        %v413 = vadd.f32 %v345, %v346
        %414 = vadd.xlane.f32.xlu0 %v413
        %v415 = vpop.xlane.xlu0 %414
        %v416 = vadd.f32 %v347, %v348
        %417 = vadd.xlane.f32.xlu0 %v416
        %v418 = vpop.xlane.xlu0 %417
        %v419 = vadd.f32 %v349, %v350
        %420 = vadd.xlane.f32.xlu0 %v419
        %v421 = vpop.xlane.xlu0 %420
        %v422 = vadd.f32 %v351, %v352
        %423 = vadd.xlane.f32.xlu0 %v422
        %v424 = vpop.xlane.xlu0 %423
        %v425 = vadd.f32 %v353, %v354
        %426 = vadd.xlane.f32.xlu0 %v425
        %v427 = vpop.xlane.xlu0 %426
        %v428 = vadd.f32 %v355, %v356
        %429 = vadd.xlane.f32.xlu0 %v428
        %v430 = vpop.xlane.xlu0 %429
        %v431 = vadd.f32 %v357, %v358
        %432 = vadd.xlane.f32.xlu0 %v431
        %v433 = vpop.xlane.xlu0 %432
        %v434 = vadd.f32 %v359, %v360
        %435 = vadd.xlane.f32.xlu0 %v434
        %v436 = vpop.xlane.xlu0 %435
        %v437 = vadd.f32 %v361, %v362
        %438 = vadd.xlane.f32.xlu0 %v437
        %v439 = vpop.xlane.xlu0 %438
        %v440 = vadd.f32 %v363, %v364
        %441 = vadd.xlane.f32.xlu0 %v440
        %v442 = vpop.xlane.xlu0 %441
        %v443 = vadd.f32 %v365, %v366
        %444 = vadd.xlane.f32.xlu0 %v443
        %v445 = vpop.xlane.xlu0 %444
        %v446 = vadd.f32 %v367, %v368
        %447 = vadd.xlane.f32.xlu0 %v446
        %v448 = vpop.xlane.xlu0 %447
        %v449 = vadd.f32 %v369, %v370
        %450 = vadd.xlane.f32.xlu0 %v449
        %v451 = vpop.xlane.xlu0 %450
        %v452 = vadd.f32 %v371, %v372
        %453 = vadd.xlane.f32.xlu0 %v452
        %v454 = vpop.xlane.xlu0 %453
        %v455 = vadd.f32 %v373, %v374
        %456 = vadd.xlane.f32.xlu0 %v455
        %v457 = vpop.xlane.xlu0 %456
        %v458 = vadd.f32 %v375, %v376
        %459 = vadd.xlane.f32.xlu0 %v458
        %v460 = vpop.xlane.xlu0 %459
        %v461 = vadd.f32 %v377, %v378
        %462 = vadd.xlane.f32.xlu0 %v461
        %v463 = vpop.xlane.xlu0 %462
        %v464 = vadd.f32 %v379, %v380
        %465 = vadd.xlane.f32.xlu0 %v464
        %v466 = vpop.xlane.xlu0 %465
        %v467 = vadd.f32 %v381, %v382
        %468 = vadd.xlane.f32.xlu0 %v467
        %v469 = vpop.xlane.xlu0 %468
        %v470 = vadd.f32 %v383, %v384
        %471 = vadd.xlane.f32.xlu0 %v470
        %v472 = vpop.xlane.xlu0 %471
        %v473 = vadd.f32 %v385, %v386
        %474 = vadd.xlane.f32.xlu0 %v473
        %v475 = vpop.xlane.xlu0 %474
        %v476 = vadd.f32 %v387, %v388
        %477 = vadd.xlane.f32.xlu0 %v476
        %v478 = vpop.xlane.xlu0 %477
        %v479 = vadd.f32 %v389, %v390
        %480 = vadd.xlane.f32.xlu0 %v479
        %v481 = vpop.xlane.xlu0 %480
        %v482 = vadd.f32 %v391, %v392
        %483 = vadd.xlane.f32.xlu0 %v482
        %v484 = vpop.xlane.xlu0 %483
        %v485 = vadd.f32 %v393, %v394
        %486 = vadd.xlane.f32.xlu0 %v485
        %v487 = vpop.xlane.xlu0 %486
        %v488 = vadd.f32 %v395, %v396
        %489 = vadd.xlane.f32.xlu0 %v488
        %v490 = vpop.xlane.xlu0 %489
        %v491 = vadd.f32 %v397, %v398
        %492 = vadd.xlane.f32.xlu0 %v491
        %v493 = vpop.xlane.xlu0 %492
        %v494 = vadd.f32 %v399, %v400
        %495 = vadd.xlane.f32.xlu0 %v494
        %v496 = vpop.xlane.xlu0 %495
        %v497 = vrcp.pop 256.0
        %v498 = vmul.f32 256.0, %v497
        %v499 = vsub.f32 1.0, %v498
        %v500 = vmul.f32 %v497, %v499
        %v501 = vadd.f32 %v497, %v500
        %vm502 = vweird.f32 %v497
        %v503 = vsel %vm502, %v497, %v501
        %v504 = vmul.f32 %v403, %v503
        %v505 = vmul.f32 %v406, %v503
        %v506 = vmul.f32 %v409, %v503
        %v507 = vmul.f32 %v412, %v503
        %v508 = vmul.f32 %v415, %v503
        %v509 = vmul.f32 %v418, %v503
        %v510 = vmul.f32 %v421, %v503
        %v511 = vmul.f32 %v424, %v503
        %v512 = vmul.f32 %v427, %v503
        %v513 = vmul.f32 %v430, %v503
        %v514 = vmul.f32 %v433, %v503
        %v515 = vmul.f32 %v436, %v503
        %v516 = vmul.f32 %v439, %v503
        %v517 = vmul.f32 %v442, %v503
        %v518 = vmul.f32 %v445, %v503
        %v519 = vmul.f32 %v448, %v503
        %v520 = vmul.f32 %v451, %v503
        %v521 = vmul.f32 %v454, %v503
        %v522 = vmul.f32 %v457, %v503
        %v523 = vmul.f32 %v460, %v503
        %v524 = vmul.f32 %v463, %v503
        %v525 = vmul.f32 %v466, %v503
        %v526 = vmul.f32 %v469, %v503
        %v527 = vmul.f32 %v472, %v503
        %v528 = vmul.f32 %v475, %v503
        %v529 = vmul.f32 %v478, %v503
        %v530 = vmul.f32 %v481, %v503
        %v531 = vmul.f32 %v484, %v503
        %v532 = vmul.f32 %v487, %v503
        %v533 = vmul.f32 %v490, %v503
        %v534 = vmul.f32 %v493, %v503
        %v535 = vmul.f32 %v496, %v503
        %v536 = vsub.f32 %v337, %v504
        %v537 = vsub.f32 %v338, %v504
        %v538 = vsub.f32 %v339, %v505
        %v539 = vsub.f32 %v340, %v505
        %v540 = vsub.f32 %v341, %v506
        %v541 = vsub.f32 %v342, %v506
        %v542 = vsub.f32 %v343, %v507
        %v543 = vsub.f32 %v344, %v507
        %v544 = vsub.f32 %v345, %v508
        %v545 = vsub.f32 %v346, %v508
        %v546 = vsub.f32 %v347, %v509
        %v547 = vsub.f32 %v348, %v509
        %v548 = vsub.f32 %v349, %v510
        %v549 = vsub.f32 %v350, %v510
        %v550 = vsub.f32 %v351, %v511
        %v551 = vsub.f32 %v352, %v511
        %v552 = vsub.f32 %v353, %v512
        %v553 = vsub.f32 %v354, %v512
        %v554 = vsub.f32 %v355, %v513
        %v555 = vsub.f32 %v356, %v513
        %v556 = vsub.f32 %v357, %v514
        %v557 = vsub.f32 %v358, %v514
        %v558 = vsub.f32 %v359, %v515
        %v559 = vsub.f32 %v360, %v515
        %v560 = vsub.f32 %v361, %v516
        %v561 = vsub.f32 %v362, %v516
        %v562 = vsub.f32 %v363, %v517
        %v563 = vsub.f32 %v364, %v517
        %v564 = vsub.f32 %v365, %v518
        %v565 = vsub.f32 %v366, %v518
        %v566 = vsub.f32 %v367, %v519
        %v567 = vsub.f32 %v368, %v519
        %v568 = vsub.f32 %v369, %v520
        %v569 = vsub.f32 %v370, %v520
        %v570 = vsub.f32 %v371, %v521
        %v571 = vsub.f32 %v372, %v521
        %v572 = vsub.f32 %v373, %v522
        %v573 = vsub.f32 %v374, %v522
        %v574 = vsub.f32 %v375, %v523
        %v575 = vsub.f32 %v376, %v523
        %v576 = vsub.f32 %v377, %v524
        %v577 = vsub.f32 %v378, %v524
        %v578 = vsub.f32 %v379, %v525
        %v579 = vsub.f32 %v380, %v525
        %v580 = vsub.f32 %v381, %v526
        %v581 = vsub.f32 %v382, %v526
        %v582 = vsub.f32 %v383, %v527
        %v583 = vsub.f32 %v384, %v527
        %v584 = vsub.f32 %v385, %v528
        %v585 = vsub.f32 %v386, %v528
        %v586 = vsub.f32 %v387, %v529
        %v587 = vsub.f32 %v388, %v529
        %v588 = vsub.f32 %v389, %v530
        %v589 = vsub.f32 %v390, %v530
        %v590 = vsub.f32 %v391, %v531
        %v591 = vsub.f32 %v392, %v531
        %v592 = vsub.f32 %v393, %v532
        %v593 = vsub.f32 %v394, %v532
        %v594 = vsub.f32 %v395, %v533
        %v595 = vsub.f32 %v396, %v533
        %v596 = vsub.f32 %v397, %v534
        %v597 = vsub.f32 %v398, %v534
        %v598 = vsub.f32 %v399, %v535
        %v599 = vsub.f32 %v400, %v535
        %v600 = vmul.f32 %v536, %v536
        %v601 = vmul.f32 %v537, %v537
        %v602 = vmul.f32 %v538, %v538
        %v603 = vmul.f32 %v539, %v539
        %v604 = vmul.f32 %v540, %v540
        %v605 = vmul.f32 %v541, %v541
        %v606 = vmul.f32 %v542, %v542
        %v607 = vmul.f32 %v543, %v543
        %v608 = vmul.f32 %v544, %v544
        %v609 = vmul.f32 %v545, %v545
        %v610 = vmul.f32 %v546, %v546
        %v611 = vmul.f32 %v547, %v547
        %v612 = vmul.f32 %v548, %v548
        %v613 = vmul.f32 %v549, %v549
        %v614 = vmul.f32 %v550, %v550
        %v615 = vmul.f32 %v551, %v551
        %v616 = vmul.f32 %v552, %v552
        %v617 = vmul.f32 %v553, %v553
        %v618 = vmul.f32 %v554, %v554
        %v619 = vmul.f32 %v555, %v555
        %v620 = vmul.f32 %v556, %v556
        %v621 = vmul.f32 %v557, %v557
        %v622 = vmul.f32 %v558, %v558
        %v623 = vmul.f32 %v559, %v559
        %v624 = vmul.f32 %v560, %v560
        %v625 = vmul.f32 %v561, %v561
        %v626 = vmul.f32 %v562, %v562
        %v627 = vmul.f32 %v563, %v563
        %v628 = vmul.f32 %v564, %v564
        %v629 = vmul.f32 %v565, %v565
        %v630 = vmul.f32 %v566, %v566
        %v631 = vmul.f32 %v567, %v567
        %v632 = vmul.f32 %v568, %v568
        %v633 = vmul.f32 %v569, %v569
        %v634 = vmul.f32 %v570, %v570
        %v635 = vmul.f32 %v571, %v571
        %v636 = vmul.f32 %v572, %v572
        %v637 = vmul.f32 %v573, %v573
        %v638 = vmul.f32 %v574, %v574
        %v639 = vmul.f32 %v575, %v575
        %v640 = vmul.f32 %v576, %v576
        %v641 = vmul.f32 %v577, %v577
        %v642 = vmul.f32 %v578, %v578
        %v643 = vmul.f32 %v579, %v579
        %v644 = vmul.f32 %v580, %v580
        %v645 = vmul.f32 %v581, %v581
        %v646 = vmul.f32 %v582, %v582
        %v647 = vmul.f32 %v583, %v583
        %v648 = vmul.f32 %v584, %v584
        %v649 = vmul.f32 %v585, %v585
        %v650 = vmul.f32 %v586, %v586
        %v651 = vmul.f32 %v587, %v587
        %v652 = vmul.f32 %v588, %v588
        %v653 = vmul.f32 %v589, %v589
        %v654 = vmul.f32 %v590, %v590
        %v655 = vmul.f32 %v591, %v591
        %v656 = vmul.f32 %v592, %v592
        %v657 = vmul.f32 %v593, %v593
        %v658 = vmul.f32 %v594, %v594
        %v659 = vmul.f32 %v595, %v595
        %v660 = vmul.f32 %v596, %v596
        %v661 = vmul.f32 %v597, %v597
        %v662 = vmul.f32 %v598, %v598
        %v663 = vmul.f32 %v599, %v599
        %v664 = vadd.f32 %v600, %v601
        %665 = vadd.xlane.f32.xlu0 %v664
        %v666 = vpop.xlane.xlu0 %665
        %v667 = vadd.f32 %v602, %v603
        %668 = vadd.xlane.f32.xlu0 %v667
        %v669 = vpop.xlane.xlu0 %668
        %v670 = vadd.f32 %v604, %v605
        %671 = vadd.xlane.f32.xlu0 %v670
        %v672 = vpop.xlane.xlu0 %671
        %v673 = vadd.f32 %v606, %v607
        %674 = vadd.xlane.f32.xlu0 %v673
        %v675 = vpop.xlane.xlu0 %674
        %v676 = vadd.f32 %v608, %v609
        %677 = vadd.xlane.f32.xlu0 %v676
        %v678 = vpop.xlane.xlu0 %677
        %v679 = vadd.f32 %v610, %v611
        %680 = vadd.xlane.f32.xlu0 %v679
        %v681 = vpop.xlane.xlu0 %680
        %v682 = vadd.f32 %v612, %v613
        %683 = vadd.xlane.f32.xlu0 %v682
        %v684 = vpop.xlane.xlu0 %683
        %v685 = vadd.f32 %v614, %v615
        %686 = vadd.xlane.f32.xlu0 %v685
        %v687 = vpop.xlane.xlu0 %686
        %v688 = vadd.f32 %v616, %v617
        %689 = vadd.xlane.f32.xlu0 %v688
        %v690 = vpop.xlane.xlu0 %689
        %v691 = vadd.f32 %v618, %v619
        %692 = vadd.xlane.f32.xlu0 %v691
        %v693 = vpop.xlane.xlu0 %692
        %v694 = vadd.f32 %v620, %v621
        %695 = vadd.xlane.f32.xlu0 %v694
        %v696 = vpop.xlane.xlu0 %695
        %v697 = vadd.f32 %v622, %v623
        %698 = vadd.xlane.f32.xlu0 %v697
        %v699 = vpop.xlane.xlu0 %698
        %v700 = vadd.f32 %v624, %v625
        %701 = vadd.xlane.f32.xlu0 %v700
        %v702 = vpop.xlane.xlu0 %701
        %v703 = vadd.f32 %v626, %v627
        %704 = vadd.xlane.f32.xlu0 %v703
        %v705 = vpop.xlane.xlu0 %704
        %v706 = vadd.f32 %v628, %v629
        %707 = vadd.xlane.f32.xlu0 %v706
        %v708 = vpop.xlane.xlu0 %707
        %v709 = vadd.f32 %v630, %v631
        %710 = vadd.xlane.f32.xlu0 %v709
        %v711 = vpop.xlane.xlu0 %710
        %v712 = vadd.f32 %v632, %v633
        %713 = vadd.xlane.f32.xlu0 %v712
        %v714 = vpop.xlane.xlu0 %713
        %v715 = vadd.f32 %v634, %v635
        %716 = vadd.xlane.f32.xlu0 %v715
        %v717 = vpop.xlane.xlu0 %716
        %v718 = vadd.f32 %v636, %v637
        %719 = vadd.xlane.f32.xlu0 %v718
        %v720 = vpop.xlane.xlu0 %719
        %v721 = vadd.f32 %v638, %v639
        %722 = vadd.xlane.f32.xlu0 %v721
        %v723 = vpop.xlane.xlu0 %722
        %v724 = vadd.f32 %v640, %v641
        %725 = vadd.xlane.f32.xlu0 %v724
        %v726 = vpop.xlane.xlu0 %725
        %v727 = vadd.f32 %v642, %v643
        %728 = vadd.xlane.f32.xlu0 %v727
        %v729 = vpop.xlane.xlu0 %728
        %v730 = vadd.f32 %v644, %v645
        %731 = vadd.xlane.f32.xlu0 %v730
        %v732 = vpop.xlane.xlu0 %731
        %v733 = vadd.f32 %v646, %v647
        %734 = vadd.xlane.f32.xlu0 %v733
        %v735 = vpop.xlane.xlu0 %734
        %v736 = vadd.f32 %v648, %v649
        %737 = vadd.xlane.f32.xlu0 %v736
        %v738 = vpop.xlane.xlu0 %737
        %v739 = vadd.f32 %v650, %v651
        %740 = vadd.xlane.f32.xlu0 %v739
        %v741 = vpop.xlane.xlu0 %740
        %v742 = vadd.f32 %v652, %v653
        %743 = vadd.xlane.f32.xlu0 %v742
        %v744 = vpop.xlane.xlu0 %743
        %v745 = vadd.f32 %v654, %v655
        %746 = vadd.xlane.f32.xlu0 %v745
        %v747 = vpop.xlane.xlu0 %746
        %v748 = vadd.f32 %v656, %v657
        %749 = vadd.xlane.f32.xlu0 %v748
        %v750 = vpop.xlane.xlu0 %749
        %v751 = vadd.f32 %v658, %v659
        %752 = vadd.xlane.f32.xlu0 %v751
        %v753 = vpop.xlane.xlu0 %752
        %v754 = vadd.f32 %v660, %v661
        %755 = vadd.xlane.f32.xlu0 %v754
        %v756 = vpop.xlane.xlu0 %755
        %v757 = vadd.f32 %v662, %v663
        %758 = vadd.xlane.f32.xlu0 %v757
        %v759 = vpop.xlane.xlu0 %758
        %v760 = vmul.f32 %v666, %v503
        %v761 = vmul.f32 %v669, %v503
        %v762 = vmul.f32 %v672, %v503
        %v763 = vmul.f32 %v675, %v503
        %v764 = vmul.f32 %v678, %v503
        %v765 = vmul.f32 %v681, %v503
        %v766 = vmul.f32 %v684, %v503
        %v767 = vmul.f32 %v687, %v503
        %v768 = vmul.f32 %v690, %v503
        %v769 = vmul.f32 %v693, %v503
        %v770 = vmul.f32 %v696, %v503
        %v771 = vmul.f32 %v699, %v503
        %v772 = vmul.f32 %v702, %v503
        %v773 = vmul.f32 %v705, %v503
        %v774 = vmul.f32 %v708, %v503
        %v775 = vmul.f32 %v711, %v503
        %v776 = vmul.f32 %v714, %v503
        %v777 = vmul.f32 %v717, %v503
        %v778 = vmul.f32 %v720, %v503
        %v779 = vmul.f32 %v723, %v503
        %v780 = vmul.f32 %v726, %v503
        %v781 = vmul.f32 %v729, %v503
        %v782 = vmul.f32 %v732, %v503
        %v783 = vmul.f32 %v735, %v503
        %v784 = vmul.f32 %v738, %v503
        %v785 = vmul.f32 %v741, %v503
        %v786 = vmul.f32 %v744, %v503
        %v787 = vmul.f32 %v747, %v503
        %v788 = vmul.f32 %v750, %v503
        %v789 = vmul.f32 %v753, %v503
        %v790 = vmul.f32 %v756, %v503
        %v791 = vmul.f32 %v759, %v503
        %v792 = vadd.f32 %v760, 1e-05
        %v793 = vadd.f32 %v761, 1e-05
        %v794 = vadd.f32 %v762, 1e-05
        %v795 = vadd.f32 %v763, 1e-05
        %v796 = vadd.f32 %v764, 1e-05
        %v797 = vadd.f32 %v765, 1e-05
        %v798 = vadd.f32 %v766, 1e-05
        %v799 = vadd.f32 %v767, 1e-05
        %v800 = vadd.f32 %v768, 1e-05
        %v801 = vadd.f32 %v769, 1e-05
        %v802 = vadd.f32 %v770, 1e-05
        %v803 = vadd.f32 %v771, 1e-05
        %v804 = vadd.f32 %v772, 1e-05
        %v805 = vadd.f32 %v773, 1e-05
        %v806 = vadd.f32 %v774, 1e-05
        %v807 = vadd.f32 %v775, 1e-05
        %v808 = vadd.f32 %v776, 1e-05
        %v809 = vadd.f32 %v777, 1e-05
        %v810 = vadd.f32 %v778, 1e-05
        %v811 = vadd.f32 %v779, 1e-05
        %v812 = vadd.f32 %v780, 1e-05
        %v813 = vadd.f32 %v781, 1e-05
        %v814 = vadd.f32 %v782, 1e-05
        %v815 = vadd.f32 %v783, 1e-05
        %v816 = vadd.f32 %v784, 1e-05
        %v817 = vadd.f32 %v785, 1e-05
        %v818 = vadd.f32 %v786, 1e-05
        %v819 = vadd.f32 %v787, 1e-05
        %v820 = vadd.f32 %v788, 1e-05
        %v821 = vadd.f32 %v789, 1e-05
        %v822 = vadd.f32 %v790, 1e-05
        %v823 = vadd.f32 %v791, 1e-05
        %v824 = vrsqrt.pop %v792
        %v825 = vmul.f32 %v824, %v792
        %v826 = vmul.f32 %v825, %v824
        %v827 = vmul.f32 0.5, %v826
        %v828 = vsub.f32 1.5, %v827
        %v829 = vmul.f32 %v824, %v828
        %vm830 = vweird.f32 %v792
        %vm831 = vweird.f32 %v824
        %vm832 = vmor %vm830, %vm831
        %v833 = vsel %vm832, %v824, %v829
        %v834 = vrsqrt.pop %v793
        %v835 = vmul.f32 %v834, %v793
        %v836 = vmul.f32 %v835, %v834
        %v837 = vmul.f32 0.5, %v836
        %v838 = vsub.f32 1.5, %v837
        %v839 = vmul.f32 %v834, %v838
        %vm840 = vweird.f32 %v793
        %vm841 = vweird.f32 %v834
        %vm842 = vmor %vm840, %vm841
        %v843 = vsel %vm842, %v834, %v839
        %v844 = vrsqrt.pop %v794
        %v845 = vmul.f32 %v844, %v794
        %v846 = vmul.f32 %v845, %v844
        %v847 = vmul.f32 0.5, %v846
        %v848 = vsub.f32 1.5, %v847
        %v849 = vmul.f32 %v844, %v848
        %vm850 = vweird.f32 %v794
        %vm851 = vweird.f32 %v844
        %vm852 = vmor %vm850, %vm851
        %v853 = vsel %vm852, %v844, %v849
        %v854 = vrsqrt.pop %v795
        %v855 = vmul.f32 %v854, %v795
        %v856 = vmul.f32 %v855, %v854
        %v857 = vmul.f32 0.5, %v856
        %v858 = vsub.f32 1.5, %v857
        %v859 = vmul.f32 %v854, %v858
        %vm860 = vweird.f32 %v795
        %vm861 = vweird.f32 %v854
        %vm862 = vmor %vm860, %vm861
        %v863 = vsel %vm862, %v854, %v859
        %v864 = vrsqrt.pop %v796
        %v865 = vmul.f32 %v864, %v796
        %v866 = vmul.f32 %v865, %v864
        %v867 = vmul.f32 0.5, %v866
        %v868 = vsub.f32 1.5, %v867
        %v869 = vmul.f32 %v864, %v868
        %vm870 = vweird.f32 %v796
        %vm871 = vweird.f32 %v864
        %vm872 = vmor %vm870, %vm871
        %v873 = vsel %vm872, %v864, %v869
        %v874 = vrsqrt.pop %v797
        %v875 = vmul.f32 %v874, %v797
        %v876 = vmul.f32 %v875, %v874
        %v877 = vmul.f32 0.5, %v876
        %v878 = vsub.f32 1.5, %v877
        %v879 = vmul.f32 %v874, %v878
        %vm880 = vweird.f32 %v797
        %vm881 = vweird.f32 %v874
        %vm882 = vmor %vm880, %vm881
        %v883 = vsel %vm882, %v874, %v879
        %v884 = vrsqrt.pop %v798
        %v885 = vmul.f32 %v884, %v798
        %v886 = vmul.f32 %v885, %v884
        %v887 = vmul.f32 0.5, %v886
        %v888 = vsub.f32 1.5, %v887
        %v889 = vmul.f32 %v884, %v888
        %vm890 = vweird.f32 %v798
        %vm891 = vweird.f32 %v884
        %vm892 = vmor %vm890, %vm891
        %v893 = vsel %vm892, %v884, %v889
        %v894 = vrsqrt.pop %v799
        %v895 = vmul.f32 %v894, %v799
        %v896 = vmul.f32 %v895, %v894
        %v897 = vmul.f32 0.5, %v896
        %v898 = vsub.f32 1.5, %v897
        %v899 = vmul.f32 %v894, %v898
        %vm900 = vweird.f32 %v799
        %vm901 = vweird.f32 %v894
        %vm902 = vmor %vm900, %vm901
        %v903 = vsel %vm902, %v894, %v899
        %v904 = vrsqrt.pop %v800
        %v905 = vmul.f32 %v904, %v800
        %v906 = vmul.f32 %v905, %v904
        %v907 = vmul.f32 0.5, %v906
        %v908 = vsub.f32 1.5, %v907
        %v909 = vmul.f32 %v904, %v908
        %vm910 = vweird.f32 %v800
        %vm911 = vweird.f32 %v904
        %vm912 = vmor %vm910, %vm911
        %v913 = vsel %vm912, %v904, %v909
        %v914 = vrsqrt.pop %v801
        %v915 = vmul.f32 %v914, %v801
        %v916 = vmul.f32 %v915, %v914
        %v917 = vmul.f32 0.5, %v916
        %v918 = vsub.f32 1.5, %v917
        %v919 = vmul.f32 %v914, %v918
        %vm920 = vweird.f32 %v801
        %vm921 = vweird.f32 %v914
        %vm922 = vmor %vm920, %vm921
        %v923 = vsel %vm922, %v914, %v919
        %v924 = vrsqrt.pop %v802
        %v925 = vmul.f32 %v924, %v802
        %v926 = vmul.f32 %v925, %v924
        %v927 = vmul.f32 0.5, %v926
        %v928 = vsub.f32 1.5, %v927
        %v929 = vmul.f32 %v924, %v928
        %vm930 = vweird.f32 %v802
        %vm931 = vweird.f32 %v924
        %vm932 = vmor %vm930, %vm931
        %v933 = vsel %vm932, %v924, %v929
        %v934 = vrsqrt.pop %v803
        %v935 = vmul.f32 %v934, %v803
        %v936 = vmul.f32 %v935, %v934
        %v937 = vmul.f32 0.5, %v936
        %v938 = vsub.f32 1.5, %v937
        %v939 = vmul.f32 %v934, %v938
        %vm940 = vweird.f32 %v803
        %vm941 = vweird.f32 %v934
        %vm942 = vmor %vm940, %vm941
        %v943 = vsel %vm942, %v934, %v939
        %v944 = vrsqrt.pop %v804
        %v945 = vmul.f32 %v944, %v804
        %v946 = vmul.f32 %v945, %v944
        %v947 = vmul.f32 0.5, %v946
        %v948 = vsub.f32 1.5, %v947
        %v949 = vmul.f32 %v944, %v948
        %vm950 = vweird.f32 %v804
        %vm951 = vweird.f32 %v944
        %vm952 = vmor %vm950, %vm951
        %v953 = vsel %vm952, %v944, %v949
        %v954 = vrsqrt.pop %v805
        %v955 = vmul.f32 %v954, %v805
        %v956 = vmul.f32 %v955, %v954
        %v957 = vmul.f32 0.5, %v956
        %v958 = vsub.f32 1.5, %v957
        %v959 = vmul.f32 %v954, %v958
        %vm960 = vweird.f32 %v805
        %vm961 = vweird.f32 %v954
        %vm962 = vmor %vm960, %vm961
        %v963 = vsel %vm962, %v954, %v959
        %v964 = vrsqrt.pop %v806
        %v965 = vmul.f32 %v964, %v806
        %v966 = vmul.f32 %v965, %v964
        %v967 = vmul.f32 0.5, %v966
        %v968 = vsub.f32 1.5, %v967
        %v969 = vmul.f32 %v964, %v968
        %vm970 = vweird.f32 %v806
        %vm971 = vweird.f32 %v964
        %vm972 = vmor %vm970, %vm971
        %v973 = vsel %vm972, %v964, %v969
        %v974 = vrsqrt.pop %v807
        %v975 = vmul.f32 %v974, %v807
        %v976 = vmul.f32 %v975, %v974
        %v977 = vmul.f32 0.5, %v976
        %v978 = vsub.f32 1.5, %v977
        %v979 = vmul.f32 %v974, %v978
        %vm980 = vweird.f32 %v807
        %vm981 = vweird.f32 %v974
        %vm982 = vmor %vm980, %vm981
        %v983 = vsel %vm982, %v974, %v979
        %v984 = vrsqrt.pop %v808
        %v985 = vmul.f32 %v984, %v808
        %v986 = vmul.f32 %v985, %v984
        %v987 = vmul.f32 0.5, %v986
        %v988 = vsub.f32 1.5, %v987
        %v989 = vmul.f32 %v984, %v988
        %vm990 = vweird.f32 %v808
        %vm991 = vweird.f32 %v984
        %vm992 = vmor %vm990, %vm991
        %v993 = vsel %vm992, %v984, %v989
        %v994 = vrsqrt.pop %v809
        %v995 = vmul.f32 %v994, %v809
        %v996 = vmul.f32 %v995, %v994
        %v997 = vmul.f32 0.5, %v996
        %v998 = vsub.f32 1.5, %v997
        %v999 = vmul.f32 %v994, %v998
        %vm1000 = vweird.f32 %v809
        %vm1001 = vweird.f32 %v994
        %vm1002 = vmor %vm1000, %vm1001
        %v1003 = vsel %vm1002, %v994, %v999
        %v1004 = vrsqrt.pop %v810
        %v1005 = vmul.f32 %v1004, %v810
        %v1006 = vmul.f32 %v1005, %v1004
        %v1007 = vmul.f32 0.5, %v1006
        %v1008 = vsub.f32 1.5, %v1007
        %v1009 = vmul.f32 %v1004, %v1008
        %vm1010 = vweird.f32 %v810
        %vm1011 = vweird.f32 %v1004
        %vm1012 = vmor %vm1010, %vm1011
        %v1013 = vsel %vm1012, %v1004, %v1009
        %v1014 = vrsqrt.pop %v811
        %v1015 = vmul.f32 %v1014, %v811
        %v1016 = vmul.f32 %v1015, %v1014
        %v1017 = vmul.f32 0.5, %v1016
        %v1018 = vsub.f32 1.5, %v1017
        %v1019 = vmul.f32 %v1014, %v1018
        %vm1020 = vweird.f32 %v811
        %vm1021 = vweird.f32 %v1014
        %vm1022 = vmor %vm1020, %vm1021
        %v1023 = vsel %vm1022, %v1014, %v1019
        %v1024 = vrsqrt.pop %v812
        %v1025 = vmul.f32 %v1024, %v812
        %v1026 = vmul.f32 %v1025, %v1024
        %v1027 = vmul.f32 0.5, %v1026
        %v1028 = vsub.f32 1.5, %v1027
        %v1029 = vmul.f32 %v1024, %v1028
        %vm1030 = vweird.f32 %v812
        %vm1031 = vweird.f32 %v1024
        %vm1032 = vmor %vm1030, %vm1031
        %v1033 = vsel %vm1032, %v1024, %v1029
        %v1034 = vrsqrt.pop %v813
        %v1035 = vmul.f32 %v1034, %v813
        %v1036 = vmul.f32 %v1035, %v1034
        %v1037 = vmul.f32 0.5, %v1036
        %v1038 = vsub.f32 1.5, %v1037
        %v1039 = vmul.f32 %v1034, %v1038
        %vm1040 = vweird.f32 %v813
        %vm1041 = vweird.f32 %v1034
        %vm1042 = vmor %vm1040, %vm1041
        %v1043 = vsel %vm1042, %v1034, %v1039
        %v1044 = vrsqrt.pop %v814
        %v1045 = vmul.f32 %v1044, %v814
        %v1046 = vmul.f32 %v1045, %v1044
        %v1047 = vmul.f32 0.5, %v1046
        %v1048 = vsub.f32 1.5, %v1047
        %v1049 = vmul.f32 %v1044, %v1048
        %vm1050 = vweird.f32 %v814
        %vm1051 = vweird.f32 %v1044
        %vm1052 = vmor %vm1050, %vm1051
        %v1053 = vsel %vm1052, %v1044, %v1049
        %v1054 = vrsqrt.pop %v815
        %v1055 = vmul.f32 %v1054, %v815
        %v1056 = vmul.f32 %v1055, %v1054
        %v1057 = vmul.f32 0.5, %v1056
        %v1058 = vsub.f32 1.5, %v1057
        %v1059 = vmul.f32 %v1054, %v1058
        %vm1060 = vweird.f32 %v815
        %vm1061 = vweird.f32 %v1054
        %vm1062 = vmor %vm1060, %vm1061
        %v1063 = vsel %vm1062, %v1054, %v1059
        %v1064 = vrsqrt.pop %v816
        %v1065 = vmul.f32 %v1064, %v816
        %v1066 = vmul.f32 %v1065, %v1064
        %v1067 = vmul.f32 0.5, %v1066
        %v1068 = vsub.f32 1.5, %v1067
        %v1069 = vmul.f32 %v1064, %v1068
        %vm1070 = vweird.f32 %v816
        %vm1071 = vweird.f32 %v1064
        %vm1072 = vmor %vm1070, %vm1071
        %v1073 = vsel %vm1072, %v1064, %v1069
        %v1074 = vrsqrt.pop %v817
        %v1075 = vmul.f32 %v1074, %v817
        %v1076 = vmul.f32 %v1075, %v1074
        %v1077 = vmul.f32 0.5, %v1076
        %v1078 = vsub.f32 1.5, %v1077
        %v1079 = vmul.f32 %v1074, %v1078
        %vm1080 = vweird.f32 %v817
        %vm1081 = vweird.f32 %v1074
        %vm1082 = vmor %vm1080, %vm1081
        %v1083 = vsel %vm1082, %v1074, %v1079
        %v1084 = vrsqrt.pop %v818
        %v1085 = vmul.f32 %v1084, %v818
        %v1086 = vmul.f32 %v1085, %v1084
        %v1087 = vmul.f32 0.5, %v1086
        %v1088 = vsub.f32 1.5, %v1087
        %v1089 = vmul.f32 %v1084, %v1088
        %vm1090 = vweird.f32 %v818
        %vm1091 = vweird.f32 %v1084
        %vm1092 = vmor %vm1090, %vm1091
        %v1093 = vsel %vm1092, %v1084, %v1089
        %v1094 = vrsqrt.pop %v819
        %v1095 = vmul.f32 %v1094, %v819
        %v1096 = vmul.f32 %v1095, %v1094
        %v1097 = vmul.f32 0.5, %v1096
        %v1098 = vsub.f32 1.5, %v1097
        %v1099 = vmul.f32 %v1094, %v1098
        %vm1100 = vweird.f32 %v819
        %vm1101 = vweird.f32 %v1094
        %vm1102 = vmor %vm1100, %vm1101
        %v1103 = vsel %vm1102, %v1094, %v1099
        %v1104 = vrsqrt.pop %v820
        %v1105 = vmul.f32 %v1104, %v820
        %v1106 = vmul.f32 %v1105, %v1104
        %v1107 = vmul.f32 0.5, %v1106
        %v1108 = vsub.f32 1.5, %v1107
        %v1109 = vmul.f32 %v1104, %v1108
        %vm1110 = vweird.f32 %v820
        %vm1111 = vweird.f32 %v1104
        %vm1112 = vmor %vm1110, %vm1111
        %v1113 = vsel %vm1112, %v1104, %v1109
        %v1114 = vrsqrt.pop %v821
        %v1115 = vmul.f32 %v1114, %v821
        %v1116 = vmul.f32 %v1115, %v1114
        %v1117 = vmul.f32 0.5, %v1116
        %v1118 = vsub.f32 1.5, %v1117
        %v1119 = vmul.f32 %v1114, %v1118
        %vm1120 = vweird.f32 %v821
        %vm1121 = vweird.f32 %v1114
        %vm1122 = vmor %vm1120, %vm1121
        %v1123 = vsel %vm1122, %v1114, %v1119
        %v1124 = vrsqrt.pop %v822
        %v1125 = vmul.f32 %v1124, %v822
        %v1126 = vmul.f32 %v1125, %v1124
        %v1127 = vmul.f32 0.5, %v1126
        %v1128 = vsub.f32 1.5, %v1127
        %v1129 = vmul.f32 %v1124, %v1128
        %vm1130 = vweird.f32 %v822
        %vm1131 = vweird.f32 %v1124
        %vm1132 = vmor %vm1130, %vm1131
        %v1133 = vsel %vm1132, %v1124, %v1129
        %v1134 = vrsqrt.pop %v823
        %v1135 = vmul.f32 %v1134, %v823
        %v1136 = vmul.f32 %v1135, %v1134
        %v1137 = vmul.f32 0.5, %v1136
        %v1138 = vsub.f32 1.5, %v1137
        %v1139 = vmul.f32 %v1134, %v1138
        %vm1140 = vweird.f32 %v823
        %vm1141 = vweird.f32 %v1134
        %vm1142 = vmor %vm1140, %vm1141
        %v1143 = vsel %vm1142, %v1134, %v1139
        %v1144 = vmul.f32 %v536, %v833
        %v1145 = vmul.f32 %v537, %v833
        %v1146 = vmul.f32 %v538, %v843
        %v1147 = vmul.f32 %v539, %v843
        %v1148 = vmul.f32 %v540, %v853
        %v1149 = vmul.f32 %v541, %v853
        %v1150 = vmul.f32 %v542, %v863
        %v1151 = vmul.f32 %v543, %v863
        %v1152 = vmul.f32 %v544, %v873
        %v1153 = vmul.f32 %v545, %v873
        %v1154 = vmul.f32 %v546, %v883
        %v1155 = vmul.f32 %v547, %v883
        %v1156 = vmul.f32 %v548, %v893
        %v1157 = vmul.f32 %v549, %v893
        %v1158 = vmul.f32 %v550, %v903
        %v1159 = vmul.f32 %v551, %v903
        %v1160 = vmul.f32 %v552, %v913
        %v1161 = vmul.f32 %v553, %v913
        %v1162 = vmul.f32 %v554, %v923
        %v1163 = vmul.f32 %v555, %v923
        %v1164 = vmul.f32 %v556, %v933
        %v1165 = vmul.f32 %v557, %v933
        %v1166 = vmul.f32 %v558, %v943
        %v1167 = vmul.f32 %v559, %v943
        %v1168 = vmul.f32 %v560, %v953
        %v1169 = vmul.f32 %v561, %v953
        %v1170 = vmul.f32 %v562, %v963
        %v1171 = vmul.f32 %v563, %v963
        %v1172 = vmul.f32 %v564, %v973
        %v1173 = vmul.f32 %v565, %v973
        %v1174 = vmul.f32 %v566, %v983
        %v1175 = vmul.f32 %v567, %v983
        %v1176 = vmul.f32 %v568, %v993
        %v1177 = vmul.f32 %v569, %v993
        %v1178 = vmul.f32 %v570, %v1003
        %v1179 = vmul.f32 %v571, %v1003
        %v1180 = vmul.f32 %v572, %v1013
        %v1181 = vmul.f32 %v573, %v1013
        %v1182 = vmul.f32 %v574, %v1023
        %v1183 = vmul.f32 %v575, %v1023
        %v1184 = vmul.f32 %v576, %v1033
        %v1185 = vmul.f32 %v577, %v1033
        %v1186 = vmul.f32 %v578, %v1043
        %v1187 = vmul.f32 %v579, %v1043
        %v1188 = vmul.f32 %v580, %v1053
        %v1189 = vmul.f32 %v581, %v1053
        %v1190 = vmul.f32 %v582, %v1063
        %v1191 = vmul.f32 %v583, %v1063
        %v1192 = vmul.f32 %v584, %v1073
        %v1193 = vmul.f32 %v585, %v1073
        %v1194 = vmul.f32 %v586, %v1083
        %v1195 = vmul.f32 %v587, %v1083
        %v1196 = vmul.f32 %v588, %v1093
        %v1197 = vmul.f32 %v589, %v1093
        %v1198 = vmul.f32 %v590, %v1103
        %v1199 = vmul.f32 %v591, %v1103
        %v1200 = vmul.f32 %v592, %v1113
        %v1201 = vmul.f32 %v593, %v1113
        %v1202 = vmul.f32 %v594, %v1123
        %v1203 = vmul.f32 %v595, %v1123
        %v1204 = vmul.f32 %v596, %v1133
        %v1205 = vmul.f32 %v597, %v1133
        %v1206 = vmul.f32 %v598, %v1143
        %v1207 = vmul.f32 %v599, %v1143
        %v1208 = vld [vmem:[#allocation5] sm:$0x3]
        %v1210 = vperm.slane %v1208, 0
        %v1211 = vperm.slane %v1208, 1
        %v1214 = vmul.f32 %v1144, %v1210
        %v1215 = vmul.f32 %v1145, %v1211
        %v1216 = vmul.f32 %v1146, %v1210
        %v1217 = vmul.f32 %v1147, %v1211
        %v1218 = vmul.f32 %v1148, %v1210
        %v1219 = vmul.f32 %v1149, %v1211
        %v1220 = vmul.f32 %v1150, %v1210
        %v1221 = vmul.f32 %v1151, %v1211
        %v1222 = vmul.f32 %v1152, %v1210
        %v1223 = vmul.f32 %v1153, %v1211
        %v1224 = vmul.f32 %v1154, %v1210
        %v1225 = vmul.f32 %v1155, %v1211
        %v1226 = vmul.f32 %v1156, %v1210
        %v1227 = vmul.f32 %v1157, %v1211
        %v1228 = vmul.f32 %v1158, %v1210
        %v1229 = vmul.f32 %v1159, %v1211
        %v1230 = vmul.f32 %v1160, %v1210
        %v1231 = vmul.f32 %v1161, %v1211
        %v1232 = vmul.f32 %v1162, %v1210
        %v1233 = vmul.f32 %v1163, %v1211
        %v1234 = vmul.f32 %v1164, %v1210
        %v1235 = vmul.f32 %v1165, %v1211
        %v1236 = vmul.f32 %v1166, %v1210
        %v1237 = vmul.f32 %v1167, %v1211
        %v1238 = vmul.f32 %v1168, %v1210
        %v1239 = vmul.f32 %v1169, %v1211
        %v1240 = vmul.f32 %v1170, %v1210
        %v1241 = vmul.f32 %v1171, %v1211
        %v1242 = vmul.f32 %v1172, %v1210
        %v1243 = vmul.f32 %v1173, %v1211
        %v1244 = vmul.f32 %v1174, %v1210
        %v1245 = vmul.f32 %v1175, %v1211
        %v1246 = vmul.f32 %v1176, %v1210
        %v1247 = vmul.f32 %v1177, %v1211
        %v1248 = vmul.f32 %v1178, %v1210
        %v1249 = vmul.f32 %v1179, %v1211
        %v1250 = vmul.f32 %v1180, %v1210
        %v1251 = vmul.f32 %v1181, %v1211
        %v1252 = vmul.f32 %v1182, %v1210
        %v1253 = vmul.f32 %v1183, %v1211
        %v1254 = vmul.f32 %v1184, %v1210
        %v1255 = vmul.f32 %v1185, %v1211
        %v1256 = vmul.f32 %v1186, %v1210
        %v1257 = vmul.f32 %v1187, %v1211
        %v1258 = vmul.f32 %v1188, %v1210
        %v1259 = vmul.f32 %v1189, %v1211
        %v1260 = vmul.f32 %v1190, %v1210
        %v1261 = vmul.f32 %v1191, %v1211
        %v1262 = vmul.f32 %v1192, %v1210
        %v1263 = vmul.f32 %v1193, %v1211
        %v1264 = vmul.f32 %v1194, %v1210
        %v1265 = vmul.f32 %v1195, %v1211
        %v1266 = vmul.f32 %v1196, %v1210
        %v1267 = vmul.f32 %v1197, %v1211
        %v1268 = vmul.f32 %v1198, %v1210
        %v1269 = vmul.f32 %v1199, %v1211
        %v1270 = vmul.f32 %v1200, %v1210
        %v1271 = vmul.f32 %v1201, %v1211
        %v1272 = vmul.f32 %v1202, %v1210
        %v1273 = vmul.f32 %v1203, %v1211
        %v1274 = vmul.f32 %v1204, %v1210
        %v1275 = vmul.f32 %v1205, %v1211
        %v1276 = vmul.f32 %v1206, %v1210
        %v1277 = vmul.f32 %v1207, %v1211
        %v1278 = vld [vmem:[#allocation7] sm:$0x3]
        %v1280 = vperm.slane %v1278, 0
        %v1281 = vperm.slane %v1278, 1
        %v1284 = vadd.f32 %v1214, %v1280
        %v1285 = vadd.f32 %v1215, %v1281
        %v1286 = vadd.f32 %v1216, %v1280
        %v1287 = vadd.f32 %v1217, %v1281
        %v1288 = vadd.f32 %v1218, %v1280
        %v1289 = vadd.f32 %v1219, %v1281
        %v1290 = vadd.f32 %v1220, %v1280
        %v1291 = vadd.f32 %v1221, %v1281
        %v1292 = vadd.f32 %v1222, %v1280
        %v1293 = vadd.f32 %v1223, %v1281
        %v1294 = vadd.f32 %v1224, %v1280
        %v1295 = vadd.f32 %v1225, %v1281
        %v1296 = vadd.f32 %v1226, %v1280
        %v1297 = vadd.f32 %v1227, %v1281
        %v1298 = vadd.f32 %v1228, %v1280
        %v1299 = vadd.f32 %v1229, %v1281
        %v1300 = vadd.f32 %v1230, %v1280
        %v1301 = vadd.f32 %v1231, %v1281
        %v1302 = vadd.f32 %v1232, %v1280
        %v1303 = vadd.f32 %v1233, %v1281
        %v1304 = vadd.f32 %v1234, %v1280
        %v1305 = vadd.f32 %v1235, %v1281
        %v1306 = vadd.f32 %v1236, %v1280
        %v1307 = vadd.f32 %v1237, %v1281
        %v1308 = vadd.f32 %v1238, %v1280
        %v1309 = vadd.f32 %v1239, %v1281
        %v1310 = vadd.f32 %v1240, %v1280
        %v1311 = vadd.f32 %v1241, %v1281
        %v1312 = vadd.f32 %v1242, %v1280
        %v1313 = vadd.f32 %v1243, %v1281
        %v1314 = vadd.f32 %v1244, %v1280
        %v1315 = vadd.f32 %v1245, %v1281
        %v1316 = vadd.f32 %v1246, %v1280
        %v1317 = vadd.f32 %v1247, %v1281
        %v1318 = vadd.f32 %v1248, %v1280
        %v1319 = vadd.f32 %v1249, %v1281
        %v1320 = vadd.f32 %v1250, %v1280
        %v1321 = vadd.f32 %v1251, %v1281
        %v1322 = vadd.f32 %v1252, %v1280
        %v1323 = vadd.f32 %v1253, %v1281
        %v1324 = vadd.f32 %v1254, %v1280
        %v1325 = vadd.f32 %v1255, %v1281
        %v1326 = vadd.f32 %v1256, %v1280
        %v1327 = vadd.f32 %v1257, %v1281
        %v1328 = vadd.f32 %v1258, %v1280
        %v1329 = vadd.f32 %v1259, %v1281
        %v1330 = vadd.f32 %v1260, %v1280
        %v1331 = vadd.f32 %v1261, %v1281
        %v1332 = vadd.f32 %v1262, %v1280
        %v1333 = vadd.f32 %v1263, %v1281
        %v1334 = vadd.f32 %v1264, %v1280
        %v1335 = vadd.f32 %v1265, %v1281
        %v1336 = vadd.f32 %v1266, %v1280
        %v1337 = vadd.f32 %v1267, %v1281
        %v1338 = vadd.f32 %v1268, %v1280
        %v1339 = vadd.f32 %v1269, %v1281
        %v1340 = vadd.f32 %v1270, %v1280
        %v1341 = vadd.f32 %v1271, %v1281
        %v1342 = vadd.f32 %v1272, %v1280
        %v1343 = vadd.f32 %v1273, %v1281
        %v1344 = vadd.f32 %v1274, %v1280
        %v1345 = vadd.f32 %v1275, %v1281
        %v1346 = vadd.f32 %v1276, %v1280
        %v1347 = vadd.f32 %v1277, %v1281
        %v1348 = vld [vmem:[#allocation8] sm:$0xff]
        %v1349 = vld [vmem:[#allocation8 + $0x8] sm:$0xff]
        %v1350 = vld [vmem:[#allocation8 + $0x10] sm:$0xff]
        %v1351 = vld [vmem:[#allocation8 + $0x18] sm:$0xff]
        %v1352 = vld [vmem:[#allocation8 + $0x20] sm:$0xff]
        %v1353 = vld [vmem:[#allocation8 + $0x28] sm:$0xff]
        %v1354 = vld [vmem:[#allocation8 + $0x30] sm:$0xff]
        %v1355 = vld [vmem:[#allocation8 + $0x38] sm:$0xff]
        %v1356 = vld [vmem:[#allocation8 + $0x40] sm:$0xff]
        %v1357 = vld [vmem:[#allocation8 + $0x48] sm:$0xff]
        %v1358 = vld [vmem:[#allocation8 + $0x50] sm:$0xff]
        %v1359 = vld [vmem:[#allocation8 + $0x58] sm:$0xff]
        %v1360 = vld [vmem:[#allocation8 + $0x60] sm:$0xff]
        %v1361 = vld [vmem:[#allocation8 + $0x68] sm:$0xff]
        %v1362 = vld [vmem:[#allocation8 + $0x70] sm:$0xff]
        %v1363 = vld [vmem:[#allocation8 + $0x78] sm:$0xff]
        %v1364 = vld [vmem:[#allocation8 + $0x80] sm:$0xff]
        %v1365 = vld [vmem:[#allocation8 + $0x88] sm:$0xff]
        %v1366 = vld [vmem:[#allocation8 + $0x90] sm:$0xff]
        %v1367 = vld [vmem:[#allocation8 + $0x98] sm:$0xff]
        %v1368 = vld [vmem:[#allocation8 + $0xa0] sm:$0xff]
        %v1369 = vld [vmem:[#allocation8 + $0xa8] sm:$0xff]
        %v1370 = vld [vmem:[#allocation8 + $0xb0] sm:$0xff]
        %v1371 = vld [vmem:[#allocation8 + $0xb8] sm:$0xff]
        %v1372 = vld [vmem:[#allocation8 + $0xc0] sm:$0xff]
        %v1373 = vld [vmem:[#allocation8 + $0xc8] sm:$0xff]
        %v1374 = vld [vmem:[#allocation8 + $0xd0] sm:$0xff]
        %v1375 = vld [vmem:[#allocation8 + $0xd8] sm:$0xff]
        %v1376 = vld [vmem:[#allocation8 + $0xe0] sm:$0xff]
        %v1377 = vld [vmem:[#allocation8 + $0xe8] sm:$0xff]
        %v1378 = vld [vmem:[#allocation8 + $0xf0] sm:$0xff]
        %v1379 = vld [vmem:[#allocation8 + $0xf8] sm:$0xff]
        %v1380 = vld [vmem:[#allocation8 + $0x100] sm:$0xff]
        %v1381 = vld [vmem:[#allocation8 + $0x108] sm:$0xff]
        %v1382 = vld [vmem:[#allocation8 + $0x110] sm:$0xff]
        %v1383 = vld [vmem:[#allocation8 + $0x118] sm:$0xff]
        %v1384 = vld [vmem:[#allocation8 + $0x120] sm:$0xff]
        %v1385 = vld [vmem:[#allocation8 + $0x128] sm:$0xff]
        %v1386 = vld [vmem:[#allocation8 + $0x130] sm:$0xff]
        %v1387 = vld [vmem:[#allocation8 + $0x138] sm:$0xff]
        %v1388 = vld [vmem:[#allocation8 + $0x140] sm:$0xff]
        %v1389 = vld [vmem:[#allocation8 + $0x148] sm:$0xff]
        %v1390 = vld [vmem:[#allocation8 + $0x150] sm:$0xff]
        %v1391 = vld [vmem:[#allocation8 + $0x158] sm:$0xff]
        %v1392 = vld [vmem:[#allocation8 + $0x160] sm:$0xff]
        %v1393 = vld [vmem:[#allocation8 + $0x168] sm:$0xff]
        %v1394 = vld [vmem:[#allocation8 + $0x170] sm:$0xff]
        %v1395 = vld [vmem:[#allocation8 + $0x178] sm:$0xff]
        %v1396 = vld [vmem:[#allocation8 + $0x180] sm:$0xff]
        %v1397 = vld [vmem:[#allocation8 + $0x188] sm:$0xff]
        %v1398 = vld [vmem:[#allocation8 + $0x190] sm:$0xff]
        %v1399 = vld [vmem:[#allocation8 + $0x198] sm:$0xff]
        %v1400 = vld [vmem:[#allocation8 + $0x1a0] sm:$0xff]
        %v1401 = vld [vmem:[#allocation8 + $0x1a8] sm:$0xff]
        %v1402 = vld [vmem:[#allocation8 + $0x1b0] sm:$0xff]
        %v1403 = vld [vmem:[#allocation8 + $0x1b8] sm:$0xff]
        %v1404 = vld [vmem:[#allocation8 + $0x1c0] sm:$0xff]
        %v1405 = vld [vmem:[#allocation8 + $0x1c8] sm:$0xff]
        %v1406 = vld [vmem:[#allocation8 + $0x1d0] sm:$0xff]
        %v1407 = vld [vmem:[#allocation8 + $0x1d8] sm:$0xff]
        %v1408 = vld [vmem:[#allocation8 + $0x1e0] sm:$0xff]
        %v1409 = vld [vmem:[#allocation8 + $0x1e8] sm:$0xff]
        %v1410 = vld [vmem:[#allocation8 + $0x1f0] sm:$0xff]
        %v1411 = vld [vmem:[#allocation8 + $0x1f8] sm:$0xff]
        %v1412 = vld [vmem:[%s333] sm:$0x3]
        %v1414 = vperm.slane %v1412, 0
        %v1415 = vperm.slane %v1412, 1
        %1418 = vmatpush.msra.mxu0 %v1378
        %1419 = vmatpush.msra.mxu0 %v1376
        %1420 = vmatpush.msra.mxu0 %v1374
        %1421 = vmatpush.msra.mxu0 %v1372
        %1422 = vmatpush.msra.mxu0 %v1370
        %1423 = vmatpush.msra.mxu0 %v1368
        %1424 = vmatpush.msra.mxu0 %v1366
        %1425 = vmatpush.msra.mxu0 %v1364
        %1426 = vmatpush.msra.mxu0 %v1362
        %1427 = vmatpush.msra.mxu0 %v1360
        %1428 = vmatpush.msra.mxu0 %v1358
        %1429 = vmatpush.msra.mxu0 %v1356
        %1430 = vmatpush.msra.mxu0 %v1354
        %1431 = vmatpush.msra.mxu0 %v1352
        %1432 = vmatpush.msra.mxu0 %v1350
        %1433 = vmatpush.msra.mxu0 %v1348
        %1434 = vmatmul.f32.gmra.mxu0 %v1284
        %v1435 = vpop.f32.mrf.mxu0
        %v1436 = vadd.f32 %v1414, %v1435
        %1437 = vmatmul.f32.gmra.mxu0 %v1286
        %v1438 = vpop.f32.mrf.mxu0
        %v1439 = vadd.f32 %v1414, %v1438
        %1440 = vmatmul.f32.gmra.mxu0 %v1288
        %v1441 = vpop.f32.mrf.mxu0
        %v1442 = vadd.f32 %v1414, %v1441
        %1443 = vmatmul.f32.gmra.mxu0 %v1290
        %v1444 = vpop.f32.mrf.mxu0
        %v1445 = vadd.f32 %v1414, %v1444
        %1446 = vmatmul.f32.gmra.mxu0 %v1292
        %v1447 = vpop.f32.mrf.mxu0
        %v1448 = vadd.f32 %v1414, %v1447
        %1449 = vmatmul.f32.gmra.mxu0 %v1294
        %v1450 = vpop.f32.mrf.mxu0
        %v1451 = vadd.f32 %v1414, %v1450
        %1452 = vmatmul.f32.gmra.mxu0 %v1296
        %v1453 = vpop.f32.mrf.mxu0
        %v1454 = vadd.f32 %v1414, %v1453
        %1455 = vmatmul.f32.gmra.mxu0 %v1298
        %v1456 = vpop.f32.mrf.mxu0
        %v1457 = vadd.f32 %v1414, %v1456
        %1458 = vmatmul.f32.gmra.mxu0 %v1300
        %v1459 = vpop.f32.mrf.mxu0
        %v1460 = vadd.f32 %v1414, %v1459
        %1461 = vmatmul.f32.gmra.mxu0 %v1302
        %v1462 = vpop.f32.mrf.mxu0
        %v1463 = vadd.f32 %v1414, %v1462
        %1464 = vmatmul.f32.gmra.mxu0 %v1304
        %v1465 = vpop.f32.mrf.mxu0
        %v1466 = vadd.f32 %v1414, %v1465
        %1467 = vmatmul.f32.gmra.mxu0 %v1306
        %v1468 = vpop.f32.mrf.mxu0
        %v1469 = vadd.f32 %v1414, %v1468
        %1470 = vmatmul.f32.gmra.mxu0 %v1308
        %v1471 = vpop.f32.mrf.mxu0
        %v1472 = vadd.f32 %v1414, %v1471
        %1473 = vmatmul.f32.gmra.mxu0 %v1310
        %v1474 = vpop.f32.mrf.mxu0
        %v1475 = vadd.f32 %v1414, %v1474
        %1476 = vmatmul.f32.gmra.mxu0 %v1312
        %v1477 = vpop.f32.mrf.mxu0
        %v1478 = vadd.f32 %v1414, %v1477
        %1479 = vmatmul.f32.gmra.mxu0 %v1314
        %v1480 = vpop.f32.mrf.mxu0
        %v1481 = vadd.f32 %v1414, %v1480
        %1482 = vmatmul.f32.gmra.mxu0 %v1316
        %v1483 = vpop.f32.mrf.mxu0
        %v1484 = vadd.f32 %v1414, %v1483
        %1485 = vmatmul.f32.gmra.mxu0 %v1318
        %v1486 = vpop.f32.mrf.mxu0
        %v1487 = vadd.f32 %v1414, %v1486
        %1488 = vmatmul.f32.gmra.mxu0 %v1320
        %v1489 = vpop.f32.mrf.mxu0
        %v1490 = vadd.f32 %v1414, %v1489
        %1491 = vmatmul.f32.gmra.mxu0 %v1322
        %v1492 = vpop.f32.mrf.mxu0
        %v1493 = vadd.f32 %v1414, %v1492
        %1494 = vmatmul.f32.gmra.mxu0 %v1324
        %v1495 = vpop.f32.mrf.mxu0
        %v1496 = vadd.f32 %v1414, %v1495
        %1497 = vmatmul.f32.gmra.mxu0 %v1326
        %v1498 = vpop.f32.mrf.mxu0
        %v1499 = vadd.f32 %v1414, %v1498
        %1500 = vmatmul.f32.gmra.mxu0 %v1328
        %v1501 = vpop.f32.mrf.mxu0
        %v1502 = vadd.f32 %v1414, %v1501
        %1503 = vmatmul.f32.gmra.mxu0 %v1330
        %v1504 = vpop.f32.mrf.mxu0
        %v1505 = vadd.f32 %v1414, %v1504
        %1506 = vmatmul.f32.gmra.mxu0 %v1332
        %v1507 = vpop.f32.mrf.mxu0
        %v1508 = vadd.f32 %v1414, %v1507
        %1509 = vmatmul.f32.gmra.mxu0 %v1334
        %v1510 = vpop.f32.mrf.mxu0
        %v1511 = vadd.f32 %v1414, %v1510
        %1512 = vmatmul.f32.gmra.mxu0 %v1336
        %v1513 = vpop.f32.mrf.mxu0
        %v1514 = vadd.f32 %v1414, %v1513
        %1515 = vmatmul.f32.gmra.mxu0 %v1338
        %v1516 = vpop.f32.mrf.mxu0
        %v1517 = vadd.f32 %v1414, %v1516
        %1518 = vmatmul.f32.gmra.mxu0 %v1340
        %v1519 = vpop.f32.mrf.mxu0
        %v1520 = vadd.f32 %v1414, %v1519
        %1521 = vmatmul.f32.gmra.mxu0 %v1342
        %v1522 = vpop.f32.mrf.mxu0
        %v1523 = vadd.f32 %v1414, %v1522
        %1524 = vmatmul.f32.gmra.mxu0 %v1344
        %v1525 = vpop.f32.mrf.mxu0
        %v1526 = vadd.f32 %v1414, %v1525
        %1527 = vmatmul.f32.gmra.mxu0 %v1346
        %v1528 = vpop.f32.mrf.mxu0
        %v1529 = vadd.f32 %v1414, %v1528
        %1530 = vdwg.mxu0
        %1531 = vmatpush.msra.mxu0 %v1410
        %1532 = vmatpush.msra.mxu0 %v1408
        %1533 = vmatpush.msra.mxu0 %v1406
        %1534 = vmatpush.msra.mxu0 %v1404
        %1535 = vmatpush.msra.mxu0 %v1402
        %1536 = vmatpush.msra.mxu0 %v1400
        %1537 = vmatpush.msra.mxu0 %v1398
        %1538 = vmatpush.msra.mxu0 %v1396
        %1539 = vmatpush.msra.mxu0 %v1394
        %1540 = vmatpush.msra.mxu0 %v1392
        %1541 = vmatpush.msra.mxu0 %v1390
        %1542 = vmatpush.msra.mxu0 %v1388
        %1543 = vmatpush.msra.mxu0 %v1386
        %1544 = vmatpush.msra.mxu0 %v1384
        %1545 = vmatpush.msra.mxu0 %v1382
        %1546 = vmatpush.msra.mxu0 %v1380
        %1547 = vmatmul.f32.gmra.mxu0 %v1285
        %v1548 = vpop.f32.mrf.mxu0
        %v1549 = vadd.f32 %v1436, %v1548
        %1550 = vmatmul.f32.gmra.mxu0 %v1287
        %v1551 = vpop.f32.mrf.mxu0
        %v1552 = vadd.f32 %v1439, %v1551
        %1553 = vmatmul.f32.gmra.mxu0 %v1289
        %v1554 = vpop.f32.mrf.mxu0
        %v1555 = vadd.f32 %v1442, %v1554
        %1556 = vmatmul.f32.gmra.mxu0 %v1291
        %v1557 = vpop.f32.mrf.mxu0
        %v1558 = vadd.f32 %v1445, %v1557
        %1559 = vmatmul.f32.gmra.mxu0 %v1293
        %v1560 = vpop.f32.mrf.mxu0
        %v1561 = vadd.f32 %v1448, %v1560
        %1562 = vmatmul.f32.gmra.mxu0 %v1295
        %v1563 = vpop.f32.mrf.mxu0
        %v1564 = vadd.f32 %v1451, %v1563
        %1565 = vmatmul.f32.gmra.mxu0 %v1297
        %v1566 = vpop.f32.mrf.mxu0
        %v1567 = vadd.f32 %v1454, %v1566
        %1568 = vmatmul.f32.gmra.mxu0 %v1299
        %v1569 = vpop.f32.mrf.mxu0
        %v1570 = vadd.f32 %v1457, %v1569
        %1571 = vmatmul.f32.gmra.mxu0 %v1301
        %v1572 = vpop.f32.mrf.mxu0
        %v1573 = vadd.f32 %v1460, %v1572
        %1574 = vmatmul.f32.gmra.mxu0 %v1303
        %v1575 = vpop.f32.mrf.mxu0
        %v1576 = vadd.f32 %v1463, %v1575
        %1577 = vmatmul.f32.gmra.mxu0 %v1305
        %v1578 = vpop.f32.mrf.mxu0
        %v1579 = vadd.f32 %v1466, %v1578
        %1580 = vmatmul.f32.gmra.mxu0 %v1307
        %v1581 = vpop.f32.mrf.mxu0
        %v1582 = vadd.f32 %v1469, %v1581
        %1583 = vmatmul.f32.gmra.mxu0 %v1309
        %v1584 = vpop.f32.mrf.mxu0
        %v1585 = vadd.f32 %v1472, %v1584
        %1586 = vmatmul.f32.gmra.mxu0 %v1311
        %v1587 = vpop.f32.mrf.mxu0
        %v1588 = vadd.f32 %v1475, %v1587
        %1589 = vmatmul.f32.gmra.mxu0 %v1313
        %v1590 = vpop.f32.mrf.mxu0
        %v1591 = vadd.f32 %v1478, %v1590
        %1592 = vmatmul.f32.gmra.mxu0 %v1315
        %v1593 = vpop.f32.mrf.mxu0
        %v1594 = vadd.f32 %v1481, %v1593
        %1595 = vmatmul.f32.gmra.mxu0 %v1317
        %v1596 = vpop.f32.mrf.mxu0
        %v1597 = vadd.f32 %v1484, %v1596
        %1598 = vmatmul.f32.gmra.mxu0 %v1319
        %v1599 = vpop.f32.mrf.mxu0
        %v1600 = vadd.f32 %v1487, %v1599
        %1601 = vmatmul.f32.gmra.mxu0 %v1321
        %v1602 = vpop.f32.mrf.mxu0
        %v1603 = vadd.f32 %v1490, %v1602
        %1604 = vmatmul.f32.gmra.mxu0 %v1323
        %v1605 = vpop.f32.mrf.mxu0
        %v1606 = vadd.f32 %v1493, %v1605
        %1607 = vmatmul.f32.gmra.mxu0 %v1325
        %v1608 = vpop.f32.mrf.mxu0
        %v1609 = vadd.f32 %v1496, %v1608
        %1610 = vmatmul.f32.gmra.mxu0 %v1327
        %v1611 = vpop.f32.mrf.mxu0
        %v1612 = vadd.f32 %v1499, %v1611
        %1613 = vmatmul.f32.gmra.mxu0 %v1329
        %v1614 = vpop.f32.mrf.mxu0
        %v1615 = vadd.f32 %v1502, %v1614
        %1616 = vmatmul.f32.gmra.mxu0 %v1331
        %v1617 = vpop.f32.mrf.mxu0
        %v1618 = vadd.f32 %v1505, %v1617
        %1619 = vmatmul.f32.gmra.mxu0 %v1333
        %v1620 = vpop.f32.mrf.mxu0
        %v1621 = vadd.f32 %v1508, %v1620
        %1622 = vmatmul.f32.gmra.mxu0 %v1335
        %v1623 = vpop.f32.mrf.mxu0
        %v1624 = vadd.f32 %v1511, %v1623
        %1625 = vmatmul.f32.gmra.mxu0 %v1337
        %v1626 = vpop.f32.mrf.mxu0
        %v1627 = vadd.f32 %v1514, %v1626
        %1628 = vmatmul.f32.gmra.mxu0 %v1339
        %v1629 = vpop.f32.mrf.mxu0
        %v1630 = vadd.f32 %v1517, %v1629
        %1631 = vmatmul.f32.gmra.mxu0 %v1341
        %v1632 = vpop.f32.mrf.mxu0
        %v1633 = vadd.f32 %v1520, %v1632
        %1634 = vmatmul.f32.gmra.mxu0 %v1343
        %v1635 = vpop.f32.mrf.mxu0
        %v1636 = vadd.f32 %v1523, %v1635
        %1637 = vmatmul.f32.gmra.mxu0 %v1345
        %v1638 = vpop.f32.mrf.mxu0
        %v1639 = vadd.f32 %v1526, %v1638
        %1640 = vmatmul.f32.gmra.mxu0 %v1347
        %v1641 = vpop.f32.mrf.mxu0
        %v1642 = vadd.f32 %v1529, %v1641
        %1643 = vdwg.mxu0
        %1644 = vmatpush.msra.mxu0 %v1379
        %1645 = vmatpush.msra.mxu0 %v1377
        %1646 = vmatpush.msra.mxu0 %v1375
        %1647 = vmatpush.msra.mxu0 %v1373
        %1648 = vmatpush.msra.mxu0 %v1371
        %1649 = vmatpush.msra.mxu0 %v1369
        %1650 = vmatpush.msra.mxu0 %v1367
        %1651 = vmatpush.msra.mxu0 %v1365
        %1652 = vmatpush.msra.mxu0 %v1363
        %1653 = vmatpush.msra.mxu0 %v1361
        %1654 = vmatpush.msra.mxu0 %v1359
        %1655 = vmatpush.msra.mxu0 %v1357
        %1656 = vmatpush.msra.mxu0 %v1355
        %1657 = vmatpush.msra.mxu0 %v1353
        %1658 = vmatpush.msra.mxu0 %v1351
        %1659 = vmatpush.msra.mxu0 %v1349
        %1660 = vmatmul.f32.gmra.mxu0 %v1284
        %v1661 = vpop.f32.mrf.mxu0
        %v1662 = vadd.f32 %v1415, %v1661
        %1663 = vmatmul.f32.gmra.mxu0 %v1286
        %v1664 = vpop.f32.mrf.mxu0
        %v1665 = vadd.f32 %v1415, %v1664
        %1666 = vmatmul.f32.gmra.mxu0 %v1288
        %v1667 = vpop.f32.mrf.mxu0
        %v1668 = vadd.f32 %v1415, %v1667
        %1669 = vmatmul.f32.gmra.mxu0 %v1290
        %v1670 = vpop.f32.mrf.mxu0
        %v1671 = vadd.f32 %v1415, %v1670
        %1672 = vmatmul.f32.gmra.mxu0 %v1292
        %v1673 = vpop.f32.mrf.mxu0
        %v1674 = vadd.f32 %v1415, %v1673
        %1675 = vmatmul.f32.gmra.mxu0 %v1294
        %v1676 = vpop.f32.mrf.mxu0
        %v1677 = vadd.f32 %v1415, %v1676
        %1678 = vmatmul.f32.gmra.mxu0 %v1296
        %v1679 = vpop.f32.mrf.mxu0
        %v1680 = vadd.f32 %v1415, %v1679
        %1681 = vmatmul.f32.gmra.mxu0 %v1298
        %v1682 = vpop.f32.mrf.mxu0
        %v1683 = vadd.f32 %v1415, %v1682
        %1684 = vmatmul.f32.gmra.mxu0 %v1300
        %v1685 = vpop.f32.mrf.mxu0
        %v1686 = vadd.f32 %v1415, %v1685
        %1687 = vmatmul.f32.gmra.mxu0 %v1302
        %v1688 = vpop.f32.mrf.mxu0
        %v1689 = vadd.f32 %v1415, %v1688
        %1690 = vmatmul.f32.gmra.mxu0 %v1304
        %v1691 = vpop.f32.mrf.mxu0
        %v1692 = vadd.f32 %v1415, %v1691
        %1693 = vmatmul.f32.gmra.mxu0 %v1306
        %v1694 = vpop.f32.mrf.mxu0
        %v1695 = vadd.f32 %v1415, %v1694
        %1696 = vmatmul.f32.gmra.mxu0 %v1308
        %v1697 = vpop.f32.mrf.mxu0
        %v1698 = vadd.f32 %v1415, %v1697
        %1699 = vmatmul.f32.gmra.mxu0 %v1310
        %v1700 = vpop.f32.mrf.mxu0
        %v1701 = vadd.f32 %v1415, %v1700
        %1702 = vmatmul.f32.gmra.mxu0 %v1312
        %v1703 = vpop.f32.mrf.mxu0
        %v1704 = vadd.f32 %v1415, %v1703
        %1705 = vmatmul.f32.gmra.mxu0 %v1314
        %v1706 = vpop.f32.mrf.mxu0
        %v1707 = vadd.f32 %v1415, %v1706
        %1708 = vmatmul.f32.gmra.mxu0 %v1316
        %v1709 = vpop.f32.mrf.mxu0
        %v1710 = vadd.f32 %v1415, %v1709
        %1711 = vmatmul.f32.gmra.mxu0 %v1318
        %v1712 = vpop.f32.mrf.mxu0
        %v1713 = vadd.f32 %v1415, %v1712
        %1714 = vmatmul.f32.gmra.mxu0 %v1320
        %v1715 = vpop.f32.mrf.mxu0
        %v1716 = vadd.f32 %v1415, %v1715
        %1717 = vmatmul.f32.gmra.mxu0 %v1322
        %v1718 = vpop.f32.mrf.mxu0
        %v1719 = vadd.f32 %v1415, %v1718
        %1720 = vmatmul.f32.gmra.mxu0 %v1324
        %v1721 = vpop.f32.mrf.mxu0
        %v1722 = vadd.f32 %v1415, %v1721
        %1723 = vmatmul.f32.gmra.mxu0 %v1326
        %v1724 = vpop.f32.mrf.mxu0
        %v1725 = vadd.f32 %v1415, %v1724
        %1726 = vmatmul.f32.gmra.mxu0 %v1328
        %v1727 = vpop.f32.mrf.mxu0
        %v1728 = vadd.f32 %v1415, %v1727
        %1729 = vmatmul.f32.gmra.mxu0 %v1330
        %v1730 = vpop.f32.mrf.mxu0
        %v1731 = vadd.f32 %v1415, %v1730
        %1732 = vmatmul.f32.gmra.mxu0 %v1332
        %v1733 = vpop.f32.mrf.mxu0
        %v1734 = vadd.f32 %v1415, %v1733
        %1735 = vmatmul.f32.gmra.mxu0 %v1334
        %v1736 = vpop.f32.mrf.mxu0
        %v1737 = vadd.f32 %v1415, %v1736
        %1738 = vmatmul.f32.gmra.mxu0 %v1336
        %v1739 = vpop.f32.mrf.mxu0
        %v1740 = vadd.f32 %v1415, %v1739
        %1741 = vmatmul.f32.gmra.mxu0 %v1338
        %v1742 = vpop.f32.mrf.mxu0
        %v1743 = vadd.f32 %v1415, %v1742
        %1744 = vmatmul.f32.gmra.mxu0 %v1340
        %v1745 = vpop.f32.mrf.mxu0
        %v1746 = vadd.f32 %v1415, %v1745
        %1747 = vmatmul.f32.gmra.mxu0 %v1342
        %v1748 = vpop.f32.mrf.mxu0
        %v1749 = vadd.f32 %v1415, %v1748
        %1750 = vmatmul.f32.gmra.mxu0 %v1344
        %v1751 = vpop.f32.mrf.mxu0
        %v1752 = vadd.f32 %v1415, %v1751
        %1753 = vmatmul.f32.gmra.mxu0 %v1346
        %v1754 = vpop.f32.mrf.mxu0
        %v1755 = vadd.f32 %v1415, %v1754
        %1756 = vdwg.mxu0
        %1757 = vmatpush.msra.mxu0 %v1411
        %1758 = vmatpush.msra.mxu0 %v1409
        %1759 = vmatpush.msra.mxu0 %v1407
        %1760 = vmatpush.msra.mxu0 %v1405
        %1761 = vmatpush.msra.mxu0 %v1403
        %1762 = vmatpush.msra.mxu0 %v1401
        %1763 = vmatpush.msra.mxu0 %v1399
        %1764 = vmatpush.msra.mxu0 %v1397
        %1765 = vmatpush.msra.mxu0 %v1395
        %1766 = vmatpush.msra.mxu0 %v1393
        %1767 = vmatpush.msra.mxu0 %v1391
        %1768 = vmatpush.msra.mxu0 %v1389
        %1769 = vmatpush.msra.mxu0 %v1387
        %1770 = vmatpush.msra.mxu0 %v1385
        %1771 = vmatpush.msra.mxu0 %v1383
        %1772 = vmatpush.msra.mxu0 %v1381
        %1773 = vmatmul.f32.gmra.mxu0 %v1285
        %v1774 = vpop.f32.mrf.mxu0
        %v1775 = vadd.f32 %v1662, %v1774
        %1776 = vmatmul.f32.gmra.mxu0 %v1287
        %v1777 = vpop.f32.mrf.mxu0
        %v1778 = vadd.f32 %v1665, %v1777
        %1779 = vmatmul.f32.gmra.mxu0 %v1289
        %v1780 = vpop.f32.mrf.mxu0
        %v1781 = vadd.f32 %v1668, %v1780
        %1782 = vmatmul.f32.gmra.mxu0 %v1291
        %v1783 = vpop.f32.mrf.mxu0
        %v1784 = vadd.f32 %v1671, %v1783
        %1785 = vmatmul.f32.gmra.mxu0 %v1293
        %v1786 = vpop.f32.mrf.mxu0
        %v1787 = vadd.f32 %v1674, %v1786
        %1788 = vmatmul.f32.gmra.mxu0 %v1295
        %v1789 = vpop.f32.mrf.mxu0
        %v1790 = vadd.f32 %v1677, %v1789
        %1791 = vmatmul.f32.gmra.mxu0 %v1297
        %v1792 = vpop.f32.mrf.mxu0
        %v1793 = vadd.f32 %v1680, %v1792
        %1794 = vmatmul.f32.gmra.mxu0 %v1299
        %v1795 = vpop.f32.mrf.mxu0
        %v1796 = vadd.f32 %v1683, %v1795
        %1797 = vmatmul.f32.gmra.mxu0 %v1301
        %v1798 = vpop.f32.mrf.mxu0
        %v1799 = vadd.f32 %v1686, %v1798
        %1800 = vmatmul.f32.gmra.mxu0 %v1303
        %v1801 = vpop.f32.mrf.mxu0
        %v1802 = vadd.f32 %v1689, %v1801
        %1803 = vmatmul.f32.gmra.mxu0 %v1305
        %v1804 = vpop.f32.mrf.mxu0
        %v1805 = vadd.f32 %v1692, %v1804
        %1806 = vmatmul.f32.gmra.mxu0 %v1307
        %v1807 = vpop.f32.mrf.mxu0
        %v1808 = vadd.f32 %v1695, %v1807
        %1809 = vmatmul.f32.gmra.mxu0 %v1309
        %v1810 = vpop.f32.mrf.mxu0
        %v1811 = vadd.f32 %v1698, %v1810
        %1812 = vmatmul.f32.gmra.mxu0 %v1311
        %v1813 = vpop.f32.mrf.mxu0
        %v1814 = vadd.f32 %v1701, %v1813
        %1815 = vmatmul.f32.gmra.mxu0 %v1313
        %v1816 = vpop.f32.mrf.mxu0
        %v1817 = vadd.f32 %v1704, %v1816
        %1818 = vmatmul.f32.gmra.mxu0 %v1315
        %v1819 = vpop.f32.mrf.mxu0
        %v1820 = vadd.f32 %v1707, %v1819
        %1821 = vmatmul.f32.gmra.mxu0 %v1317
        %v1822 = vpop.f32.mrf.mxu0
        %v1823 = vadd.f32 %v1710, %v1822
        %1824 = vmatmul.f32.gmra.mxu0 %v1319
        %v1825 = vpop.f32.mrf.mxu0
        %v1826 = vadd.f32 %v1713, %v1825
        %1827 = vmatmul.f32.gmra.mxu0 %v1321
        %v1828 = vpop.f32.mrf.mxu0
        %v1829 = vadd.f32 %v1716, %v1828
        %1830 = vmatmul.f32.gmra.mxu0 %v1323
        %v1831 = vpop.f32.mrf.mxu0
        %v1832 = vadd.f32 %v1719, %v1831
        %1833 = vmatmul.f32.gmra.mxu0 %v1325
        %v1834 = vpop.f32.mrf.mxu0
        %v1835 = vadd.f32 %v1722, %v1834
        %1836 = vmatmul.f32.gmra.mxu0 %v1327
        %v1837 = vpop.f32.mrf.mxu0
        %v1838 = vadd.f32 %v1725, %v1837
        %1839 = vmatmul.f32.gmra.mxu0 %v1329
        %v1840 = vpop.f32.mrf.mxu0
        %v1841 = vadd.f32 %v1728, %v1840
        %1842 = vmatmul.f32.gmra.mxu0 %v1331
        %v1843 = vpop.f32.mrf.mxu0
        %v1844 = vadd.f32 %v1731, %v1843
        %1845 = vmatmul.f32.gmra.mxu0 %v1333
        %v1846 = vpop.f32.mrf.mxu0
        %v1847 = vadd.f32 %v1734, %v1846
        %1848 = vmatmul.f32.gmra.mxu0 %v1335
        %v1849 = vpop.f32.mrf.mxu0
        %v1850 = vadd.f32 %v1737, %v1849
        %1851 = vmatmul.f32.gmra.mxu0 %v1337
        %v1852 = vpop.f32.mrf.mxu0
        %v1853 = vadd.f32 %v1740, %v1852
        %1854 = vmatmul.f32.gmra.mxu0 %v1339
        %v1855 = vpop.f32.mrf.mxu0
        %v1856 = vadd.f32 %v1743, %v1855
        %1857 = vmatmul.f32.gmra.mxu0 %v1341
        %v1858 = vpop.f32.mrf.mxu0
        %v1859 = vadd.f32 %v1746, %v1858
        %1860 = vmatmul.f32.gmra.mxu0 %v1343
        %v1861 = vpop.f32.mrf.mxu0
        %v1862 = vadd.f32 %v1749, %v1861
        %1863 = vmatmul.f32.gmra.mxu0 %v1345
        %v1864 = vpop.f32.mrf.mxu0
        %v1865 = vadd.f32 %v1752, %v1864
        %1866 = vmatmul.f32.gmra.mxu0 %v1347
        %v1867 = vpop.f32.mrf.mxu0
        %v1868 = vadd.f32 %v1755, %v1867
        %1869 = vdwg.mxu0
        %v1870 = vadd.f32 %v337, %v1549
        %v1871 = vadd.f32 %v338, %v1775
        %v1872 = vadd.f32 %v339, %v1552
        %v1873 = vadd.f32 %v340, %v1778
        %v1874 = vadd.f32 %v341, %v1555
        %v1875 = vadd.f32 %v342, %v1781
        %v1876 = vadd.f32 %v343, %v1558
        %v1877 = vadd.f32 %v344, %v1784
        %v1878 = vadd.f32 %v345, %v1561
        %v1879 = vadd.f32 %v346, %v1787
        %v1880 = vadd.f32 %v347, %v1564
        %v1881 = vadd.f32 %v348, %v1790
        %v1882 = vadd.f32 %v349, %v1567
        %v1883 = vadd.f32 %v350, %v1793
        %v1884 = vadd.f32 %v351, %v1570
        %v1885 = vadd.f32 %v352, %v1796
        %v1886 = vadd.f32 %v353, %v1573
        %v1887 = vadd.f32 %v354, %v1799
        %v1888 = vadd.f32 %v355, %v1576
        %v1889 = vadd.f32 %v356, %v1802
        %v1890 = vadd.f32 %v357, %v1579
        %v1891 = vadd.f32 %v358, %v1805
        %v1892 = vadd.f32 %v359, %v1582
        %v1893 = vadd.f32 %v360, %v1808
        %v1894 = vadd.f32 %v361, %v1585
        %v1895 = vadd.f32 %v362, %v1811
        %v1896 = vadd.f32 %v363, %v1588
        %v1897 = vadd.f32 %v364, %v1814
        %v1898 = vadd.f32 %v365, %v1591
        %v1899 = vadd.f32 %v366, %v1817
        %v1900 = vadd.f32 %v367, %v1594
        %v1901 = vadd.f32 %v368, %v1820
        %v1902 = vadd.f32 %v369, %v1597
        %v1903 = vadd.f32 %v370, %v1823
        %v1904 = vadd.f32 %v371, %v1600
        %v1905 = vadd.f32 %v372, %v1826
        %v1906 = vadd.f32 %v373, %v1603
        %v1907 = vadd.f32 %v374, %v1829
        %v1908 = vadd.f32 %v375, %v1606
        %v1909 = vadd.f32 %v376, %v1832
        %v1910 = vadd.f32 %v377, %v1609
        %v1911 = vadd.f32 %v378, %v1835
        %v1912 = vadd.f32 %v379, %v1612
        %v1913 = vadd.f32 %v380, %v1838
        %v1914 = vadd.f32 %v381, %v1615
        %v1915 = vadd.f32 %v382, %v1841
        %v1916 = vadd.f32 %v383, %v1618
        %v1917 = vadd.f32 %v384, %v1844
        %v1918 = vadd.f32 %v385, %v1621
        %v1919 = vadd.f32 %v386, %v1847
        %v1920 = vadd.f32 %v387, %v1624
        %v1921 = vadd.f32 %v388, %v1850
        %v1922 = vadd.f32 %v389, %v1627
        %v1923 = vadd.f32 %v390, %v1853
        %v1924 = vadd.f32 %v391, %v1630
        %v1925 = vadd.f32 %v392, %v1856
        %v1926 = vadd.f32 %v393, %v1633
        %v1927 = vadd.f32 %v394, %v1859
        %v1928 = vadd.f32 %v395, %v1636
        %v1929 = vadd.f32 %v396, %v1862
        %v1930 = vadd.f32 %v397, %v1639
        %v1931 = vadd.f32 %v398, %v1865
        %v1932 = vadd.f32 %v399, %v1642
        %v1933 = vadd.f32 %v400, %v1868
        %1934 = vst [vmem:[%s327] sm:$0xff] %v1870
        %1935 = vst [vmem:[%s327 + $0x8] sm:$0xff] %v1871
        %1936 = vst [vmem:[%s327 + $0x10] sm:$0xff] %v1872
        %1937 = vst [vmem:[%s327 + $0x18] sm:$0xff] %v1873
        %1938 = vst [vmem:[%s327 + $0x20] sm:$0xff] %v1874
        %1939 = vst [vmem:[%s327 + $0x28] sm:$0xff] %v1875
        %1940 = vst [vmem:[%s327 + $0x30] sm:$0xff] %v1876
        %1941 = vst [vmem:[%s327 + $0x38] sm:$0xff] %v1877
        %1942 = vst [vmem:[%s327 + $0x40] sm:$0xff] %v1878
        %1943 = vst [vmem:[%s327 + $0x48] sm:$0xff] %v1879
        %1944 = vst [vmem:[%s327 + $0x50] sm:$0xff] %v1880
        %1945 = vst [vmem:[%s327 + $0x58] sm:$0xff] %v1881
        %1946 = vst [vmem:[%s327 + $0x60] sm:$0xff] %v1882
        %1947 = vst [vmem:[%s327 + $0x68] sm:$0xff] %v1883
        %1948 = vst [vmem:[%s327 + $0x70] sm:$0xff] %v1884
        %1949 = vst [vmem:[%s327 + $0x78] sm:$0xff] %v1885
        %1950 = vst [vmem:[%s327 + $0x80] sm:$0xff] %v1886
        %1951 = vst [vmem:[%s327 + $0x88] sm:$0xff] %v1887
        %1952 = vst [vmem:[%s327 + $0x90] sm:$0xff] %v1888
        %1953 = vst [vmem:[%s327 + $0x98] sm:$0xff] %v1889
        %1954 = vst [vmem:[%s327 + $0xa0] sm:$0xff] %v1890
        %1955 = vst [vmem:[%s327 + $0xa8] sm:$0xff] %v1891
        %1956 = vst [vmem:[%s327 + $0xb0] sm:$0xff] %v1892
        %1957 = vst [vmem:[%s327 + $0xb8] sm:$0xff] %v1893
        %1958 = vst [vmem:[%s327 + $0xc0] sm:$0xff] %v1894
        %1959 = vst [vmem:[%s327 + $0xc8] sm:$0xff] %v1895
        %1960 = vst [vmem:[%s327 + $0xd0] sm:$0xff] %v1896
        %1961 = vst [vmem:[%s327 + $0xd8] sm:$0xff] %v1897
        %1962 = vst [vmem:[%s327 + $0xe0] sm:$0xff] %v1898
        %1963 = vst [vmem:[%s327 + $0xe8] sm:$0xff] %v1899
        %1964 = vst [vmem:[%s327 + $0xf0] sm:$0xff] %v1900
        %1965 = vst [vmem:[%s327 + $0xf8] sm:$0xff] %v1901
        %1966 = vst [vmem:[%s327 + $0x100] sm:$0xff] %v1902
        %1967 = vst [vmem:[%s327 + $0x108] sm:$0xff] %v1903
        %1968 = vst [vmem:[%s327 + $0x110] sm:$0xff] %v1904
        %1969 = vst [vmem:[%s327 + $0x118] sm:$0xff] %v1905
        %1970 = vst [vmem:[%s327 + $0x120] sm:$0xff] %v1906
        %1971 = vst [vmem:[%s327 + $0x128] sm:$0xff] %v1907
        %1972 = vst [vmem:[%s327 + $0x130] sm:$0xff] %v1908
        %1973 = vst [vmem:[%s327 + $0x138] sm:$0xff] %v1909
        %1974 = vst [vmem:[%s327 + $0x140] sm:$0xff] %v1910
        %1975 = vst [vmem:[%s327 + $0x148] sm:$0xff] %v1911
        %1976 = vst [vmem:[%s327 + $0x150] sm:$0xff] %v1912
        %1977 = vst [vmem:[%s327 + $0x158] sm:$0xff] %v1913
        %1978 = vst [vmem:[%s327 + $0x160] sm:$0xff] %v1914
        %1979 = vst [vmem:[%s327 + $0x168] sm:$0xff] %v1915
        %1980 = vst [vmem:[%s327 + $0x170] sm:$0xff] %v1916
        %1981 = vst [vmem:[%s327 + $0x178] sm:$0xff] %v1917
        %1982 = vst [vmem:[%s327 + $0x180] sm:$0xff] %v1918
        %1983 = vst [vmem:[%s327 + $0x188] sm:$0xff] %v1919
        %1984 = vst [vmem:[%s327 + $0x190] sm:$0xff] %v1920
        %1985 = vst [vmem:[%s327 + $0x198] sm:$0xff] %v1921
        %1986 = vst [vmem:[%s327 + $0x1a0] sm:$0xff] %v1922
        %1987 = vst [vmem:[%s327 + $0x1a8] sm:$0xff] %v1923
        %1988 = vst [vmem:[%s327 + $0x1b0] sm:$0xff] %v1924
        %1989 = vst [vmem:[%s327 + $0x1b8] sm:$0xff] %v1925
        %1990 = vst [vmem:[%s327 + $0x1c0] sm:$0xff] %v1926
        %1991 = vst [vmem:[%s327 + $0x1c8] sm:$0xff] %v1927
        %1992 = vst [vmem:[%s327 + $0x1d0] sm:$0xff] %v1928
        %1993 = vst [vmem:[%s327 + $0x1d8] sm:$0xff] %v1929
        %1994 = vst [vmem:[%s327 + $0x1e0] sm:$0xff] %v1930
        %1995 = vst [vmem:[%s327 + $0x1e8] sm:$0xff] %v1931
        %1996 = vst [vmem:[%s327 + $0x1f0] sm:$0xff] %v1932
        %1997 = vst [vmem:[%s327 + $0x1f8] sm:$0xff] %v1933
        %s1998 = sand.u32 %s166, 1
        %s1999 = scalar_lea.sflag [#allocation4], %s1998
        %s2000 = sand.u32 %s166, 1
        %s2001 = smul.addr %s2000, 512
        %s2002 = scalar_lea.vmem [#allocation10], %s2001
        // Predicated region
        $region57: #{tpu_custom_call.1} parent=39 // pred_check
          %p2003 = pneg %p176
        $region58: #{tpu_custom_call.1} parent=39 // pred_check_branch
          %2005 = sbr.rel (%p2003) target = $region60
        $region59: #{tpu_custom_call.1} parent=39 // pred_region
          %s2006 = smul.u32 32, %s28
          %s2007 = smul.u32 2, %s29
          %2009 = vsyncadd %s1999, 0
          %s2010 = smul.addr %s2006, 2
          %s2011 = sadd.s32 %s2007, %s2010
          %s2012 = smul.addr %s2011, 8
          %s2013 = scalar_lea.hbm %s5, %s2012
          %s2014 = sshll.u32 %s2002, 4
          %s2015 = int_to_ptr.vmem [resolvable:$true] %s2014
          %s2016 = sshll.u32 %s2013, 4
          %s2017 = int_to_ptr.hbm [resolvable:$true] %s2016
          %2022 = dma.vmem_to_hbm [thread:$0]  %s2015, 8192, %s2017, %s1999, 256, 256, 16
        $region60: #{tpu_custom_call.1} parent=39 // pred_fallthru
          _
      $region40: #{tpu_custom_call.1} parent=5 // pred_fallthru
        _
      %p2023 = scmp.le.s32.totalorder 2, %s19
      // Predicated region
      $region61: #{tpu_custom_call.1} parent=5 // pred_check
        %p2024 = pneg %p2023
      $region62: #{tpu_custom_call.1} parent=5 // pred_check_branch
        %2026 = sbr.rel (%p2024) target = $region64
      $region63: #{tpu_custom_call.1} parent=5 // pred_region
        %s2027 = ssub.s32 %s19, 2
        // Predicated region
        $region65: #{tpu_custom_call.1} parent=63 // pred_check
          %p2028 = pneg %p182
        $region66: #{tpu_custom_call.1} parent=63 // pred_check_branch
          %2030 = sbr.rel (%p2028) target = $region68
        $region67: #{tpu_custom_call.1} parent=63 // pred_region
          %s2031 = sand.u32 %s167, 1
          %s2032 = scalar_lea.sflag [#allocation4], %s2031
          %s2033 = sand.u32 %s167, 1
          %s2034 = smul.addr %s2033, 512
          %s2035 = scalar_lea.vmem [#allocation10], %s2034
          %2037 = dma.done %s2032, 8192
        $region68: #{tpu_custom_call.1} parent=63 // pred_fallthru
          _
      $region64: #{tpu_custom_call.1} parent=5 // pred_fallthru
        _
    $region6: #{tpu_custom_call.1} parent=1 // loop_footer
      %s23 = sadd.s32 1, %s19
    $region7: #{tpu_custom_call.1} parent=1 // loop_footer_branch
      %18 = sbr.rel target = $region3
    $region8: #{tpu_custom_call.1} parent=1 // loop_exit
      _
    %2038 = vsyncpa [#allocation3], 1
    %s2039 = scalar_lea.sflag [#allocation3], 1
    %2040 = vsyncpa %s2039, 1
    %2041 = vsyncpa [#allocation6], 1
    %2042 = vsyncpa [#allocation9], 1
    %2043 = vsyncpa [#allocation4], 1
    %s2044 = scalar_lea.sflag [#allocation4], 1
    %2045 = vsyncpa %s2044, 1

</llo_original>
